<compile_context>
chip_gen: v6e
topology: v6e:2x2x1
jax: 0.10.0
libtpu: 0.0.40
codegen_flags: <defaults>
</compile_context>

<pallas_src>
import math

import jax
import jax.numpy as jnp
from jax import lax
from jax.experimental import pallas as pl
from jax.experimental.pallas import tpu as pltpu


def as_list(x):
    return x if isinstance(x, list) else [x]


def _round_up(n, m):
    return ((n + m - 1) // m) * m


def _cdiv(a, b):
    return -(-a // b)


def _vmem_capacity_bytes():
    try:
        return int(pltpu.get_tpu_info().vmem_capacity_bytes)
    except Exception:
        return 64 * 1024 * 1024  # conservative (v7x) fallback


# ----------------------------------------------------------------------------
# Fused kernel builder: one grid step == one time block of TB SNN steps.
# ----------------------------------------------------------------------------

def _build_fused_snn_kernel(ff_dims, n_rec_p, n_out_p, tb, bb, alpha, beta):
    """ff_dims = [n_in, h1_pad, ..., hL_pad] (feed-forward layer widths)."""
    n_ff = len(ff_dims) - 1
    unroll = True if tb <= 16 else 4  # short fixed loops: give LLO visibility

    def kernel(*refs):
        i = 0
        x_ref = refs[i]; i += 1
        ff_w = refs[i:i + n_ff]; i += n_ff
        rec_w_ref, rec_v_ref, ro_w_ref = refs[i:i + 3]; i += 3
        o_ref = refs[i]; i += 1
        ff_state = []
        for _ in range(n_ff):
            ff_state.append(tuple(refs[i:i + 3])); i += 3   # (syn, mem, slab)
        rec_syn_ref, rec_mem_ref, rec_slab = refs[i:i + 3]; i += 3
        flt_ref, outst_ref = refs[i:i + 2]

        t_blk = pl.program_id(1)

        # Reset all carried state at the start of each (batch-block) sequence.
        # Correct only because the time axis is the innermost grid dimension.
        @pl.when(t_blk == 0)
        def _init():
            for syn_ref, mem_ref, _ in ff_state:
                syn_ref[...] = jnp.zeros_like(syn_ref)
                mem_ref[...] = jnp.zeros_like(mem_ref)
            rec_syn_ref[...] = jnp.zeros_like(rec_syn_ref)
            rec_mem_ref[...] = jnp.zeros_like(rec_mem_ref)
            flt_ref[...] = jnp.zeros_like(flt_ref)
            outst_ref[...] = jnp.zeros_like(outst_ref)

        # ---- feed-forward spiking layers -----------------------------------
        # Hoist x @ W for the whole time block into ONE bf16 MXU matmul; the
        # per-step loop is purely element-wise f32 VPU work.  The slab first
        # holds the drive h_t and is overwritten in place with the spikes s_t.
        cur = x_ref[...]                                   # (tb, bb, n_in) bf16
        for l in range(n_ff):
            syn_ref, mem_ref, slab = ff_state[l]
            n_prev = ff_dims[l]
            n_h = ff_dims[l + 1]
            h_all = jnp.dot(cur.reshape(tb * bb, n_prev), ff_w[l][...],
                            preferred_element_type=jnp.float32)
            slab[...] = h_all.reshape(tb, bb, n_h).astype(jnp.bfloat16)

            def ff_step(t, carry, syn_ref=syn_ref, mem_ref=mem_ref, slab=slab):
                h_t = slab[t].astype(jnp.float32)          # (bb, n_h) drive
                syn = syn_ref[...]
                mem = mem_ref[...]
                spk = mem > 1.0                            # boolean spike
                slab[t] = spk.astype(jnp.bfloat16)         # layer output spikes
                syn_ref[...] = alpha * syn + h_t
                mem_ref[...] = jnp.where(spk, 0.0, beta * mem + syn)
                return carry

            lax.fori_loop(0, tb, ff_step, 0, unroll=unroll)
            cur = slab[...]                                # (tb, bb, n_h) spikes

        # ---- recurrent spiking layer ----------------------------------------
        n_prev = ff_dims[-1]
        h_all = jnp.dot(cur.reshape(tb * bb, n_prev), rec_w_ref[...],
                        preferred_element_type=jnp.float32)
        rec_slab[...] = h_all.reshape(tb, bb, n_rec_p).astype(jnp.bfloat16)
        v_mat = rec_v_ref[...]                # keep V resident (bf16), load once
        # TODO(synk): stage V in MXU weight registers across the tb loop via
        # pltpu.matmul_push_rhs/matmul_acc_lhs/matmul_pop to avoid re-pushing
        # the RHS into the systolic array every step.

        def rec_step(t, carry):
            h_t = rec_slab[t].astype(jnp.float32)
            syn = rec_syn_ref[...]
            mem = rec_mem_ref[...]
            spk = mem > 1.0
            spk_b = spk.astype(jnp.bfloat16)
            rec_slab[t] = spk_b
            r_in = jnp.dot(spk_b, v_mat, preferred_element_type=jnp.float32)
            rec_syn_ref[...] = alpha * syn + h_t + r_in
            rec_mem_ref[...] = jnp.where(spk, 0.0, beta * mem + syn)
            return carry

        lax.fori_loop(0, tb, rec_step, 0, unroll=unroll)

        # ---- membrane readout (o_ref doubles as h/out slab; lane-dense) ------
        h_all = jnp.dot(rec_slab[...].reshape(tb * bb, n_rec_p), ro_w_ref[...],
                        preferred_element_type=jnp.float32)
        o_ref[...] = h_all.reshape(tb, bb, n_out_p)

        def mem_step(t, carry):
            h_t = o_ref[t]
            flt = flt_ref[...]
            out = outst_ref[...]
            new_flt = alpha * flt + h_t
            new_out = beta * out + flt
            o_ref[t] = new_out
            flt_ref[...] = new_flt
            outst_ref[...] = new_out
            return carry

        lax.fori_loop(0, tb, mem_step, 0, unroll=unroll)

    return kernel


# ----------------------------------------------------------------------------
# Forward pass wrapper (single fused pallas_call)
# ----------------------------------------------------------------------------

def snn_mem_forward(params, x_btn, prms, *, num_tensorcores=1):
    """x_btn: (batch, nb_steps, nb_inputs) -> (batch, nb_steps, nb_outputs).

    num_tensorcores: set to 2 on v7x to shard the batch axis across both
    TensorCores (CORE_PARALLEL); leave at 1 on single-TC chips (v5e/v6e).
    """
    dt = prms["time_step"]
    alpha = float(math.exp(-dt / prms["tau_syn"]))
    beta = float(math.exp(-dt / prms["tau_mem"]))

    B, T, n_in = x_btn.shape
    nb_hidden = [int(h) for h in as_list(prms["nb_hidden"])]
    n_rec = int(prms["nb_recurrent"])
    n_out = int(prms["nb_outputs"])

    # Lane-pad every feature dim to a multiple of 128.  Padded weight columns
    # are zero => padded neurons get zero drive, never spike, padded readout
    # channels stay exactly zero.  Numerics unchanged; every store/vreg dense.
    LANE = 128
    hid_p = [_round_up(h, LANE) for h in nb_hidden]
    n_rec_p = _round_up(n_rec, LANE)
    n_out_p = _round_up(n_out, LANE)
    ff_dims = [n_in] + hid_p

    # Batch padding: multiple of 8 sublanes (zero rows => zero dynamics).
    b_pad = _round_up(B, 8)
    if num_tensorcores > 1 and b_pad % (8 * num_tensorcores) == 0 and b_pad >= 16:
        n_b_blocks = num_tensorcores
        dim_sems = (pltpu.CORE_PARALLEL, pltpu.ARBITRARY)
    else:
        # Single-TC chips: one batch block => largest hoisted-matmul M,
        # fewest grid steps.
        n_b_blocks = 1
        dim_sems = ("arbitrary", "arbitrary")
    bb = b_pad // n_b_blocks

    # ---- bf16 matmul operands (state / accumulation stay f32) ---------------
    ff_np = params["ff"]
    weights = []
    for l in range(len(nb_hidden)):
        w = ff_np[l].astype(jnp.bfloat16)
        weights.append(jnp.pad(w, ((0, ff_dims[l] - w.shape[0]),
                                   (0, ff_dims[l + 1] - w.shape[1]))))
    rec_w = params["rec_w"].astype(jnp.bfloat16)
    rec_v = params["rec_v"].astype(jnp.bfloat16)
    ro_w = params["ro_w"].astype(jnp.bfloat16)
    weights.append(jnp.pad(rec_w, ((0, hid_p[-1] - rec_w.shape[0]),
                                   (0, n_rec_p - rec_w.shape[1]))))
    weights.append(jnp.pad(rec_v, ((0, n_rec_p - rec_v.shape[0]),
                                   (0, n_rec_p - rec_v.shape[1]))))
    weights.append(jnp.pad(ro_w, ((0, n_rec_p - ro_w.shape[0]),
                                  (0, n_out_p - ro_w.shape[1]))))

    # ---- VMEM-budgeted time blocking (robust for any T, any chip) -----------
    cap = _vmem_capacity_bytes()
    budget = int(0.75 * cap)                     # leave pipelining headroom
    # TODO(synk): weights could be single-buffered (constant index_map) to free
    # a little more VMEM on v7x; counted double-buffered here to stay safe.
    weight_bytes = 2 * sum(int(w.size) for w in weights) * 2          # bf16, 2x
    state_bytes = 4 * (sum(2 * bb * h for h in hid_p)
                       + 2 * bb * n_rec_p + 2 * bb * n_out_p)
    per_tb_bytes = (2 * bb * n_in * 2            # double-buffered bf16 input blk
                    + 2 * bb * n_out_p * 4       # double-buffered f32 output blk
                    + sum(bb * h * 2 for h in hid_p)                  # bf16 slabs
                    + bb * n_rec_p * 2)
    fixed_bytes = weight_bytes + state_bytes

    n_t_blocks = max(1, _cdiv(T, 128))           # target tb ~ 128
    while True:
        tb = _round_up(_cdiv(T, n_t_blocks), 8)
        est = fixed_bytes + tb * per_tb_bytes
        if est <= budget or tb <= 8:
            break
        n_t_blocks += 1
    T_pad = n_t_blocks * tb
    vmem_limit = int(min(cap, max(est + (4 << 20), 32 << 20)))

    # ---- HBM staging: bf16, time-major, zero-padded tail steps / rows --------
    # TODO(synk): fold the time-major layout into the producer (or do the
    # transpose in-kernel with an XLU transpose) to drop this extra HBM pass.
    x_tbn = jnp.transpose(x_btn.astype(jnp.bfloat16), (1, 0, 2))
    if T_pad != T or b_pad != B:
        x_tbn = jnp.pad(x_tbn, ((0, T_pad - T), (0, b_pad - B), (0, 0)))

    in_specs = [pl.BlockSpec((tb, bb, n_in), lambda b, t: (t, b, 0))]
    for w in weights:
        in_specs.append(pl.BlockSpec(w.shape, lambda b, t: (0, 0)))
    out_spec = pl.BlockSpec((tb, bb, n_out_p), lambda b, t: (t, b, 0))

    scratch = []
    for h in hid_p:
        scratch += [pltpu.VMEM((bb, h), jnp.float32),        # syn state
                    pltpu.VMEM((bb, h), jnp.float32),        # mem state
                    pltpu.VMEM((tb, bb, h), jnp.bfloat16)]   # block h/spike slab
    scratch += [pltpu.VMEM((bb, n_rec_p), jnp.float32),
                pltpu.VMEM((bb, n_rec_p), jnp.float32),
                pltpu.VMEM((tb, bb, n_rec_p), jnp.bfloat16)]
    scratch += [pltpu.VMEM((bb, n_out_p), jnp.float32),      # flt state
                pltpu.VMEM((bb, n_out_p), jnp.float32)]      # out state

    kernel = _build_fused_snn_kernel(ff_dims, n_rec_p, n_out_p, tb, bb,
                                     alpha, beta)

    out_tbn = pl.pallas_call(
        kernel,
        out_shape=jax.ShapeDtypeStruct((T_pad, b_pad, n_out_p), jnp.float32),
        grid_spec=pltpu.PrefetchScalarGridSpec(
            num_scalar_prefetch=0,
            grid=(n_b_blocks, n_t_blocks),
            in_specs=in_specs,
            out_specs=out_spec,
            scratch_shapes=scratch),
        compiler_params=pltpu.CompilerParams(
            dimension_semantics=dim_sems,
            vmem_limit_bytes=vmem_limit),
    )(x_tbn, *weights)

    out = out_tbn[:T, :B, :n_out]
    return jnp.transpose(out, (1, 0, 2))  # back to (B, T, nb_outputs)


# ----------------------------------------------------------------------------
# SNN_mem model: deterministic parameter construction
# ----------------------------------------------------------------------------

def init_snn_mem_params(prms, key):
    """SpyTorch-style init: N(0, weight_scale/sqrt(fan_in))."""
    ws = prms.get("weight_scale", 1.0)
    nb_hidden = as_list(prms["nb_hidden"])
    sizes = [prms["nb_inputs"]] + nb_hidden
    params = {"ff": [], "rec_w": None, "rec_v": None, "ro_w": None}
    keys = jax.random.split(key, len(sizes) + 3)
    k = 0
    # feed-forward SpikingLayers
    for i in range(len(sizes) - 1):
        fan_in, fan_out = sizes[i], sizes[i + 1]
        params["ff"].append(
            jax.random.normal(keys[k], (fan_in, fan_out), jnp.float32)
            * (ws / math.sqrt(fan_in)))
        k += 1
    # RecurrentSpikingLayer
    fan_in, n_rec = nb_hidden[-1], prms["nb_recurrent"]
    params["rec_w"] = (jax.random.normal(keys[k], (fan_in, n_rec), jnp.float32)
                       * (ws / math.sqrt(fan_in)))
    k += 1
    params["rec_v"] = (jax.random.normal(keys[k], (n_rec, n_rec), jnp.float32)
                       * (ws / math.sqrt(n_rec)))
    k += 1
    # MembraneLayer readout
    params["ro_w"] = (jax.random.normal(keys[k], (n_rec, prms["nb_outputs"]),
                                        jnp.float32)
                      * (ws / math.sqrt(n_rec)))
    return params


if __name__ == "__main__":
    prms = {
        "nb_inputs": 16,
        "nb_hidden": [32],
        "nb_recurrent": 24,
        "nb_outputs": 4,
        "time_step": 1e-3,
        "tau_syn": 5e-3,
        "tau_mem": 10e-3,
        "weight_scale": 7.0,  # strong drive so spikes actually occur at small sizes
    }
    B, T = 2, 8

    key = jax.random.PRNGKey(0)
    k_params, k_x = jax.random.split(key)
    params = init_snn_mem_params(prms, k_params)

    # Synthetic binary spike input (batch, nb_steps, nb_inputs)
    x = (jax.random.uniform(k_x, (B, T, prms["nb_inputs"])) < 0.5).astype(
        jnp.float32)

    fwd = jax.jit(lambda p, xx: snn_mem_forward(p, xx, prms))
    out = fwd(params, x)
    out = jax.block_until_ready(out)
    assert out.shape == (B, T, prms["nb_outputs"])
    assert bool(jnp.all(jnp.isfinite(out)))
    print("KERNEL_OK")
</pallas_src>

<mosaic_0001>
module attributes {stable_mosaic.version = 11 : i64} {
  func.func @kernel(%arg0: i32, %arg1: i32, %arg2: memref<8x8x16xbf16, #tpu.memory_space<vmem>>, %arg3: memref<16x128xbf16, #tpu.memory_space<vmem>>, %arg4: memref<128x128xbf16, #tpu.memory_space<vmem>>, %arg5: memref<128x128xbf16, #tpu.memory_space<vmem>>, %arg6: memref<128x128xbf16, #tpu.memory_space<vmem>>, %arg7: memref<8x8x128xf32, #tpu.memory_space<vmem>>, %arg8: memref<8x128xf32, #tpu.memory_space<vmem>>, %arg9: memref<8x128xf32, #tpu.memory_space<vmem>>, %arg10: memref<8x8x128xbf16, #tpu.memory_space<vmem>>, %arg11: memref<8x128xf32, #tpu.memory_space<vmem>>, %arg12: memref<8x128xf32, #tpu.memory_space<vmem>>, %arg13: memref<8x8x128xbf16, #tpu.memory_space<vmem>>, %arg14: memref<8x128xf32, #tpu.memory_space<vmem>>, %arg15: memref<8x128xf32, #tpu.memory_space<vmem>>) attributes {dimension_semantics = [#tpu.dimension_semantics<arbitrary>, #tpu.dimension_semantics<arbitrary>], iteration_bounds = array<i64: 1, 1>, scalar_prefetch = 0 : i64, scratch_operands = 8 : i64, tpu.core_type = #tpu.core_type<tc>, window_params = [{transform_indices = @transform_0, window_bounds = array<i64: 8, 8, 16>}, {pipeline_mode = #tpu.pipeline_mode<synchronous>, transform_indices = @transform_1, window_bounds = array<i64: 16, 128>}, {pipeline_mode = #tpu.pipeline_mode<synchronous>, transform_indices = @transform_2, window_bounds = array<i64: 128, 128>}, {pipeline_mode = #tpu.pipeline_mode<synchronous>, transform_indices = @transform_3, window_bounds = array<i64: 128, 128>}, {pipeline_mode = #tpu.pipeline_mode<synchronous>, transform_indices = @transform_4, window_bounds = array<i64: 128, 128>}, {transform_indices = @transform_5, window_bounds = array<i64: 8, 8, 128>}]} {
    %c0_i32 = arith.constant 0 : i32
    %0 = arith.cmpi eq, %arg1, %c0_i32 : i32
    %1 = arith.extui %0 : i1 to i32
    %c0_i32_0 = arith.constant 0 : i32
    %2 = arith.cmpi ne, %1, %c0_i32_0 : i32
    scf.if %2 {
      %cst_423 = arith.constant 0.000000e+00 : f32
      %576 = vector.broadcast %cst_423 : f32 to vector<8x128xf32>
      %c0_424 = arith.constant 0 : index
      %c0_425 = arith.constant 0 : index
      %577 = vector.load %arg8[%c0_424, %c0_425] : memref<8x128xf32, #tpu.memory_space<vmem>>, vector<8x128xf32>
      tpu.vector_store %arg8[%c0_424, %c0_425], %576 {strides = array<i32>} : memref<8x128xf32, #tpu.memory_space<vmem>>, vector<8x128xf32>,
      %cst_426 = arith.constant 0.000000e+00 : f32
      %578 = vector.broadcast %cst_426 : f32 to vector<8x128xf32>
      %c0_427 = arith.constant 0 : index
      %c0_428 = arith.constant 0 : index
      %579 = vector.load %arg9[%c0_427, %c0_428] : memref<8x128xf32, #tpu.memory_space<vmem>>, vector<8x128xf32>
      tpu.vector_store %arg9[%c0_427, %c0_428], %578 {strides = array<i32>} : memref<8x128xf32, #tpu.memory_space<vmem>>, vector<8x128xf32>,
      %cst_429 = arith.constant 0.000000e+00 : f32
      %580 = vector.broadcast %cst_429 : f32 to vector<8x128xf32>
      %c0_430 = arith.constant 0 : index
      %c0_431 = arith.constant 0 : index
      %581 = vector.load %arg11[%c0_430, %c0_431] : memref<8x128xf32, #tpu.memory_space<vmem>>, vector<8x128xf32>
      tpu.vector_store %arg11[%c0_430, %c0_431], %580 {strides = array<i32>} : memref<8x128xf32, #tpu.memory_space<vmem>>, vector<8x128xf32>,
      %cst_432 = arith.constant 0.000000e+00 : f32
      %582 = vector.broadcast %cst_432 : f32 to vector<8x128xf32>
      %c0_433 = arith.constant 0 : index
      %c0_434 = arith.constant 0 : index
      %583 = vector.load %arg12[%c0_433, %c0_434] : memref<8x128xf32, #tpu.memory_space<vmem>>, vector<8x128xf32>
      tpu.vector_store %arg12[%c0_433, %c0_434], %582 {strides = array<i32>} : memref<8x128xf32, #tpu.memory_space<vmem>>, vector<8x128xf32>,
      %cst_435 = arith.constant 0.000000e+00 : f32
      %584 = vector.broadcast %cst_435 : f32 to vector<8x128xf32>
      %c0_436 = arith.constant 0 : index
      %c0_437 = arith.constant 0 : index
      %585 = vector.load %arg14[%c0_436, %c0_437] : memref<8x128xf32, #tpu.memory_space<vmem>>, vector<8x128xf32>
      tpu.vector_store %arg14[%c0_436, %c0_437], %584 {strides = array<i32>} : memref<8x128xf32, #tpu.memory_space<vmem>>, vector<8x128xf32>,
      %cst_438 = arith.constant 0.000000e+00 : f32
      %586 = vector.broadcast %cst_438 : f32 to vector<8x128xf32>
      %c0_439 = arith.constant 0 : index
      %c0_440 = arith.constant 0 : index
      %587 = vector.load %arg15[%c0_439, %c0_440] : memref<8x128xf32, #tpu.memory_space<vmem>>, vector<8x128xf32>
      tpu.vector_store %arg15[%c0_439, %c0_440], %586 {strides = array<i32>} : memref<8x128xf32, #tpu.memory_space<vmem>>, vector<8x128xf32>,
    } else {
    }
    %c0 = arith.constant 0 : index
    %c0_1 = arith.constant 0 : index
    %c0_2 = arith.constant 0 : index
    %3 = vector.load %arg2[%c0, %c0_1, %c0_2] : memref<8x8x16xbf16, #tpu.memory_space<vmem>>, vector<8x8x16xbf16>
    %4 = vector.shape_cast %3 : vector<8x8x16xbf16> to vector<64x16xbf16>
    %c0_3 = arith.constant 0 : index
    %c0_4 = arith.constant 0 : index
    %5 = vector.load %arg3[%c0_3, %c0_4] : memref<16x128xbf16, #tpu.memory_space<vmem>>, vector<16x128xbf16>
    %cst = arith.constant dense<0.000000e+00> : vector<64x128xf32>
    %6 = tpu.matmul %4, %5, %cst {dimension_numbers = #tpu.dot_dimension_numbers<[1], [0], [0], [1], [0, 0, 1, 1], [], []>} : vector<64x16xbf16>, vector<16x128xbf16>, vector<64x128xf32> -> vector<64x128xf32>
    %7 = vector.shape_cast %6 : vector<64x128xf32> to vector<8x8x128xf32>
    %8 = arith.truncf %7 : vector<8x8x128xf32> to vector<8x8x128xbf16>
    %c0_5 = arith.constant 0 : index
    %c0_6 = arith.constant 0 : index
    %c0_7 = arith.constant 0 : index
    %9 = vector.load %arg10[%c0_5, %c0_6, %c0_7] : memref<8x8x128xbf16, #tpu.memory_space<vmem>>, vector<8x8x128xbf16>
    tpu.vector_store %arg10[%c0_5, %c0_6, %c0_7], %8 {strides = array<i32>} : memref<8x8x128xbf16, #tpu.memory_space<vmem>>, vector<8x8x128xbf16>,
    %c0_i32_8 = arith.constant 0 : i32
    %10 = arith.index_cast %c0_i32_8 : i32 to index
    %c0_9 = arith.constant 0 : index
    %c0_10 = arith.constant 0 : index
    %11 = vector.load %arg10[%10, %c0_9, %c0_10] : memref<8x8x128xbf16, #tpu.memory_space<vmem>>, vector<1x8x128xbf16>
    %12 = vector.shape_cast %11 : vector<1x8x128xbf16> to vector<8x128xbf16>
    %13 = arith.extf %12 : vector<8x128xbf16> to vector<8x128xf32>
    %c0_11 = arith.constant 0 : index
    %c0_12 = arith.constant 0 : index
    %14 = vector.load %arg8[%c0_11, %c0_12] : memref<8x128xf32, #tpu.memory_space<vmem>>, vector<8x128xf32>
    %c0_13 = arith.constant 0 : index
    %c0_14 = arith.constant 0 : index
    %15 = vector.load %arg9[%c0_13, %c0_14] : memref<8x128xf32, #tpu.memory_space<vmem>>, vector<8x128xf32>
    %cst_15 = arith.constant 1.000000e+00 : f32
    %16 = vector.broadcast %cst_15 : f32 to vector<8x128xf32>
    %17 = arith.cmpf ogt, %15, %16 : vector<8x128xf32>
    %18 = arith.extui %17 : vector<8x128xi1> to vector<8x128xi32>
    %19 = arith.sitofp %18 : vector<8x128xi32> to vector<8x128xf32>
    %20 = arith.truncf %19 : vector<8x128xf32> to vector<8x128xbf16>
    %21 = arith.index_cast %c0_i32_8 : i32 to index
    %c0_16 = arith.constant 0 : index
    %c0_17 = arith.constant 0 : index
    %22 = vector.load %arg10[%21, %c0_16, %c0_17] : memref<8x8x128xbf16, #tpu.memory_space<vmem>>, vector<1x8x128xbf16>
    %23 = vector.shape_cast %22 : vector<1x8x128xbf16> to vector<8x128xbf16>
    %24 = vector.shape_cast %20 : vector<8x128xbf16> to vector<1x8x128xbf16>
    tpu.vector_store %arg10[%21, %c0_16, %c0_17], %24 {strides = array<i32>} : memref<8x8x128xbf16, #tpu.memory_space<vmem>>, vector<1x8x128xbf16>,
    %cst_18 = arith.constant 0.818730771 : f32
    %25 = vector.broadcast %cst_18 : f32 to vector<8x128xf32>
    %26 = arith.mulf %25, %14 : vector<8x128xf32>
    %27 = arith.addf %26, %13 : vector<8x128xf32>
    %c0_19 = arith.constant 0 : index
    %c0_20 = arith.constant 0 : index
    %28 = vector.load %arg8[%c0_19, %c0_20] : memref<8x128xf32, #tpu.memory_space<vmem>>, vector<8x128xf32>
    tpu.vector_store %arg8[%c0_19, %c0_20], %27 {strides = array<i32>} : memref<8x128xf32, #tpu.memory_space<vmem>>, vector<8x128xf32>,
    %cst_21 = arith.constant 0.904837429 : f32
    %29 = vector.broadcast %cst_21 : f32 to vector<8x128xf32>
    %30 = arith.mulf %29, %15 : vector<8x128xf32>
    %31 = arith.addf %30, %14 : vector<8x128xf32>
    %cst_22 = arith.constant 0.000000e+00 : f32
    %32 = vector.broadcast %cst_22 : f32 to vector<8x128xf32>
    %33 = arith.select %17, %32, %31 : vector<8x128xi1>, vector<8x128xf32>
    %c0_23 = arith.constant 0 : index
    %c0_24 = arith.constant 0 : index
    %34 = vector.load %arg9[%c0_23, %c0_24] : memref<8x128xf32, #tpu.memory_space<vmem>>, vector<8x128xf32>
    tpu.vector_store %arg9[%c0_23, %c0_24], %33 {strides = array<i32>} : memref<8x128xf32, #tpu.memory_space<vmem>>, vector<8x128xf32>,
    %c1_i32 = arith.constant 1 : i32
    %35 = arith.index_cast %c1_i32 : i32 to index
    %c0_25 = arith.constant 0 : index
    %c0_26 = arith.constant 0 : index
    %36 = vector.load %arg10[%35, %c0_25, %c0_26] : memref<8x8x128xbf16, #tpu.memory_space<vmem>>, vector<1x8x128xbf16>
    %37 = vector.shape_cast %36 : vector<1x8x128xbf16> to vector<8x128xbf16>
    %38 = arith.extf %37 : vector<8x128xbf16> to vector<8x128xf32>
    %c0_27 = arith.constant 0 : index
    %c0_28 = arith.constant 0 : index
    %39 = vector.load %arg8[%c0_27, %c0_28] : memref<8x128xf32, #tpu.memory_space<vmem>>, vector<8x128xf32>
    %c0_29 = arith.constant 0 : index
    %c0_30 = arith.constant 0 : index
    %40 = vector.load %arg9[%c0_29, %c0_30] : memref<8x128xf32, #tpu.memory_space<vmem>>, vector<8x128xf32>
    %cst_31 = arith.constant 1.000000e+00 : f32
    %41 = vector.broadcast %cst_31 : f32 to vector<8x128xf32>
    %42 = arith.cmpf ogt, %40, %41 : vector<8x128xf32>
    %43 = arith.extui %42 : vector<8x128xi1> to vector<8x128xi32>
    %44 = arith.sitofp %43 : vector<8x128xi32> to vector<8x128xf32>
    %45 = arith.truncf %44 : vector<8x128xf32> to vector<8x128xbf16>
    %46 = arith.index_cast %c1_i32 : i32 to index
    %c0_32 = arith.constant 0 : index
    %c0_33 = arith.constant 0 : index
    %47 = vector.load %arg10[%46, %c0_32, %c0_33] : memref<8x8x128xbf16, #tpu.memory_space<vmem>>, vector<1x8x128xbf16>
    %48 = vector.shape_cast %47 : vector<1x8x128xbf16> to vector<8x128xbf16>
    %49 = vector.shape_cast %45 : vector<8x128xbf16> to vector<1x8x128xbf16>
    tpu.vector_store %arg10[%46, %c0_32, %c0_33], %49 {strides = array<i32>} : memref<8x8x128xbf16, #tpu.memory_space<vmem>>, vector<1x8x128xbf16>,
    %cst_34 = arith.constant 0.818730771 : f32
    %50 = vector.broadcast %cst_34 : f32 to vector<8x128xf32>
    %51 = arith.mulf %50, %39 : vector<8x128xf32>
    %52 = arith.addf %51, %38 : vector<8x128xf32>
    %c0_35 = arith.constant 0 : index
    %c0_36 = arith.constant 0 : index
    %53 = vector.load %arg8[%c0_35, %c0_36] : memref<8x128xf32, #tpu.memory_space<vmem>>, vector<8x128xf32>
    tpu.vector_store %arg8[%c0_35, %c0_36], %52 {strides = array<i32>} : memref<8x128xf32, #tpu.memory_space<vmem>>, vector<8x128xf32>,
    %cst_37 = arith.constant 0.904837429 : f32
    %54 = vector.broadcast %cst_37 : f32 to vector<8x128xf32>
    %55 = arith.mulf %54, %40 : vector<8x128xf32>
    %56 = arith.addf %55, %39 : vector<8x128xf32>
    %cst_38 = arith.constant 0.000000e+00 : f32
    %57 = vector.broadcast %cst_38 : f32 to vector<8x128xf32>
    %58 = arith.select %42, %57, %56 : vector<8x128xi1>, vector<8x128xf32>
    %c0_39 = arith.constant 0 : index
    %c0_40 = arith.constant 0 : index
    %59 = vector.load %arg9[%c0_39, %c0_40] : memref<8x128xf32, #tpu.memory_space<vmem>>, vector<8x128xf32>
    tpu.vector_store %arg9[%c0_39, %c0_40], %58 {strides = array<i32>} : memref<8x128xf32, #tpu.memory_space<vmem>>, vector<8x128xf32>,
    %c2_i32 = arith.constant 2 : i32
    %60 = arith.index_cast %c2_i32 : i32 to index
    %c0_41 = arith.constant 0 : index
    %c0_42 = arith.constant 0 : index
    %61 = vector.load %arg10[%60, %c0_41, %c0_42] : memref<8x8x128xbf16, #tpu.memory_space<vmem>>, vector<1x8x128xbf16>
    %62 = vector.shape_cast %61 : vector<1x8x128xbf16> to vector<8x128xbf16>
    %63 = arith.extf %62 : vector<8x128xbf16> to vector<8x128xf32>
    %c0_43 = arith.constant 0 : index
    %c0_44 = arith.constant 0 : index
    %64 = vector.load %arg8[%c0_43, %c0_44] : memref<8x128xf32, #tpu.memory_space<vmem>>, vector<8x128xf32>
    %c0_45 = arith.constant 0 : index
    %c0_46 = arith.constant 0 : index
    %65 = vector.load %arg9[%c0_45, %c0_46] : memref<8x128xf32, #tpu.memory_space<vmem>>, vector<8x128xf32>
    %cst_47 = arith.constant 1.000000e+00 : f32
    %66 = vector.broadcast %cst_47 : f32 to vector<8x128xf32>
    %67 = arith.cmpf ogt, %65, %66 : vector<8x128xf32>
    %68 = arith.extui %67 : vector<8x128xi1> to vector<8x128xi32>
    %69 = arith.sitofp %68 : vector<8x128xi32> to vector<8x128xf32>
    %70 = arith.truncf %69 : vector<8x128xf32> to vector<8x128xbf16>
    %71 = arith.index_cast %c2_i32 : i32 to index
    %c0_48 = arith.constant 0 : index
    %c0_49 = arith.constant 0 : index
    %72 = vector.load %arg10[%71, %c0_48, %c0_49] : memref<8x8x128xbf16, #tpu.memory_space<vmem>>, vector<1x8x128xbf16>
    %73 = vector.shape_cast %72 : vector<1x8x128xbf16> to vector<8x128xbf16>
    %74 = vector.shape_cast %70 : vector<8x128xbf16> to vector<1x8x128xbf16>
    tpu.vector_store %arg10[%71, %c0_48, %c0_49], %74 {strides = array<i32>} : memref<8x8x128xbf16, #tpu.memory_space<vmem>>, vector<1x8x128xbf16>,
    %cst_50 = arith.constant 0.818730771 : f32
    %75 = vector.broadcast %cst_50 : f32 to vector<8x128xf32>
    %76 = arith.mulf %75, %64 : vector<8x128xf32>
    %77 = arith.addf %76, %63 : vector<8x128xf32>
    %c0_51 = arith.constant 0 : index
    %c0_52 = arith.constant 0 : index
    %78 = vector.load %arg8[%c0_51, %c0_52] : memref<8x128xf32, #tpu.memory_space<vmem>>, vector<8x128xf32>
    tpu.vector_store %arg8[%c0_51, %c0_52], %77 {strides = array<i32>} : memref<8x128xf32, #tpu.memory_space<vmem>>, vector<8x128xf32>,
    %cst_53 = arith.constant 0.904837429 : f32
    %79 = vector.broadcast %cst_53 : f32 to vector<8x128xf32>
    %80 = arith.mulf %79, %65 : vector<8x128xf32>
    %81 = arith.addf %80, %64 : vector<8x128xf32>
    %cst_54 = arith.constant 0.000000e+00 : f32
    %82 = vector.broadcast %cst_54 : f32 to vector<8x128xf32>
    %83 = arith.select %67, %82, %81 : vector<8x128xi1>, vector<8x128xf32>
    %c0_55 = arith.constant 0 : index
    %c0_56 = arith.constant 0 : index
    %84 = vector.load %arg9[%c0_55, %c0_56] : memref<8x128xf32, #tpu.memory_space<vmem>>, vector<8x128xf32>
    tpu.vector_store %arg9[%c0_55, %c0_56], %83 {strides = array<i32>} : memref<8x128xf32, #tpu.memory_space<vmem>>, vector<8x128xf32>,
    %c3_i32 = arith.constant 3 : i32
    %85 = arith.index_cast %c3_i32 : i32 to index
    %c0_57 = arith.constant 0 : index
    %c0_58 = arith.constant 0 : index
    %86 = vector.load %arg10[%85, %c0_57, %c0_58] : memref<8x8x128xbf16, #tpu.memory_space<vmem>>, vector<1x8x128xbf16>
    %87 = vector.shape_cast %86 : vector<1x8x128xbf16> to vector<8x128xbf16>
    %88 = arith.extf %87 : vector<8x128xbf16> to vector<8x128xf32>
    %c0_59 = arith.constant 0 : index
    %c0_60 = arith.constant 0 : index
    %89 = vector.load %arg8[%c0_59, %c0_60] : memref<8x128xf32, #tpu.memory_space<vmem>>, vector<8x128xf32>
    %c0_61 = arith.constant 0 : index
    %c0_62 = arith.constant 0 : index
    %90 = vector.load %arg9[%c0_61, %c0_62] : memref<8x128xf32, #tpu.memory_space<vmem>>, vector<8x128xf32>
    %cst_63 = arith.constant 1.000000e+00 : f32
    %91 = vector.broadcast %cst_63 : f32 to vector<8x128xf32>
    %92 = arith.cmpf ogt, %90, %91 : vector<8x128xf32>
    %93 = arith.extui %92 : vector<8x128xi1> to vector<8x128xi32>
    %94 = arith.sitofp %93 : vector<8x128xi32> to vector<8x128xf32>
    %95 = arith.truncf %94 : vector<8x128xf32> to vector<8x128xbf16>
    %96 = arith.index_cast %c3_i32 : i32 to index
    %c0_64 = arith.constant 0 : index
    %c0_65 = arith.constant 0 : index
    %97 = vector.load %arg10[%96, %c0_64, %c0_65] : memref<8x8x128xbf16, #tpu.memory_space<vmem>>, vector<1x8x128xbf16>
    %98 = vector.shape_cast %97 : vector<1x8x128xbf16> to vector<8x128xbf16>
    %99 = vector.shape_cast %95 : vector<8x128xbf16> to vector<1x8x128xbf16>
    tpu.vector_store %arg10[%96, %c0_64, %c0_65], %99 {strides = array<i32>} : memref<8x8x128xbf16, #tpu.memory_space<vmem>>, vector<1x8x128xbf16>,
    %cst_66 = arith.constant 0.818730771 : f32
    %100 = vector.broadcast %cst_66 : f32 to vector<8x128xf32>
    %101 = arith.mulf %100, %89 : vector<8x128xf32>
    %102 = arith.addf %101, %88 : vector<8x128xf32>
    %c0_67 = arith.constant 0 : index
    %c0_68 = arith.constant 0 : index
    %103 = vector.load %arg8[%c0_67, %c0_68] : memref<8x128xf32, #tpu.memory_space<vmem>>, vector<8x128xf32>
    tpu.vector_store %arg8[%c0_67, %c0_68], %102 {strides = array<i32>} : memref<8x128xf32, #tpu.memory_space<vmem>>, vector<8x128xf32>,
    %cst_69 = arith.constant 0.904837429 : f32
    %104 = vector.broadcast %cst_69 : f32 to vector<8x128xf32>
    %105 = arith.mulf %104, %90 : vector<8x128xf32>
    %106 = arith.addf %105, %89 : vector<8x128xf32>
    %cst_70 = arith.constant 0.000000e+00 : f32
    %107 = vector.broadcast %cst_70 : f32 to vector<8x128xf32>
    %108 = arith.select %92, %107, %106 : vector<8x128xi1>, vector<8x128xf32>
    %c0_71 = arith.constant 0 : index
    %c0_72 = arith.constant 0 : index
    %109 = vector.load %arg9[%c0_71, %c0_72] : memref<8x128xf32, #tpu.memory_space<vmem>>, vector<8x128xf32>
    tpu.vector_store %arg9[%c0_71, %c0_72], %108 {strides = array<i32>} : memref<8x128xf32, #tpu.memory_space<vmem>>, vector<8x128xf32>,
    %c4_i32 = arith.constant 4 : i32
    %110 = arith.index_cast %c4_i32 : i32 to index
    %c0_73 = arith.constant 0 : index
    %c0_74 = arith.constant 0 : index
    %111 = vector.load %arg10[%110, %c0_73, %c0_74] : memref<8x8x128xbf16, #tpu.memory_space<vmem>>, vector<1x8x128xbf16>
    %112 = vector.shape_cast %111 : vector<1x8x128xbf16> to vector<8x128xbf16>
    %113 = arith.extf %112 : vector<8x128xbf16> to vector<8x128xf32>
    %c0_75 = arith.constant 0 : index
    %c0_76 = arith.constant 0 : index
    %114 = vector.load %arg8[%c0_75, %c0_76] : memref<8x128xf32, #tpu.memory_space<vmem>>, vector<8x128xf32>
    %c0_77 = arith.constant 0 : index
    %c0_78 = arith.constant 0 : index
    %115 = vector.load %arg9[%c0_77, %c0_78] : memref<8x128xf32, #tpu.memory_space<vmem>>, vector<8x128xf32>
    %cst_79 = arith.constant 1.000000e+00 : f32
    %116 = vector.broadcast %cst_79 : f32 to vector<8x128xf32>
    %117 = arith.cmpf ogt, %115, %116 : vector<8x128xf32>
    %118 = arith.extui %117 : vector<8x128xi1> to vector<8x128xi32>
    %119 = arith.sitofp %118 : vector<8x128xi32> to vector<8x128xf32>
    %120 = arith.truncf %119 : vector<8x128xf32> to vector<8x128xbf16>
    %121 = arith.index_cast %c4_i32 : i32 to index
    %c0_80 = arith.constant 0 : index
    %c0_81 = arith.constant 0 : index
    %122 = vector.load %arg10[%121, %c0_80, %c0_81] : memref<8x8x128xbf16, #tpu.memory_space<vmem>>, vector<1x8x128xbf16>
    %123 = vector.shape_cast %122 : vector<1x8x128xbf16> to vector<8x128xbf16>
    %124 = vector.shape_cast %120 : vector<8x128xbf16> to vector<1x8x128xbf16>
    tpu.vector_store %arg10[%121, %c0_80, %c0_81], %124 {strides = array<i32>} : memref<8x8x128xbf16, #tpu.memory_space<vmem>>, vector<1x8x128xbf16>,
    %cst_82 = arith.constant 0.818730771 : f32
    %125 = vector.broadcast %cst_82 : f32 to vector<8x128xf32>
    %126 = arith.mulf %125, %114 : vector<8x128xf32>
    %127 = arith.addf %126, %113 : vector<8x128xf32>
    %c0_83 = arith.constant 0 : index
    %c0_84 = arith.constant 0 : index
    %128 = vector.load %arg8[%c0_83, %c0_84] : memref<8x128xf32, #tpu.memory_space<vmem>>, vector<8x128xf32>
    tpu.vector_store %arg8[%c0_83, %c0_84], %127 {strides = array<i32>} : memref<8x128xf32, #tpu.memory_space<vmem>>, vector<8x128xf32>,
    %cst_85 = arith.constant 0.904837429 : f32
    %129 = vector.broadcast %cst_85 : f32 to vector<8x128xf32>
    %130 = arith.mulf %129, %115 : vector<8x128xf32>
    %131 = arith.addf %130, %114 : vector<8x128xf32>
    %cst_86 = arith.constant 0.000000e+00 : f32
    %132 = vector.broadcast %cst_86 : f32 to vector<8x128xf32>
    %133 = arith.select %117, %132, %131 : vector<8x128xi1>, vector<8x128xf32>
    %c0_87 = arith.constant 0 : index
    %c0_88 = arith.constant 0 : index
    %134 = vector.load %arg9[%c0_87, %c0_88] : memref<8x128xf32, #tpu.memory_space<vmem>>, vector<8x128xf32>
    tpu.vector_store %arg9[%c0_87, %c0_88], %133 {strides = array<i32>} : memref<8x128xf32, #tpu.memory_space<vmem>>, vector<8x128xf32>,
    %c5_i32 = arith.constant 5 : i32
    %135 = arith.index_cast %c5_i32 : i32 to index
    %c0_89 = arith.constant 0 : index
    %c0_90 = arith.constant 0 : index
    %136 = vector.load %arg10[%135, %c0_89, %c0_90] : memref<8x8x128xbf16, #tpu.memory_space<vmem>>, vector<1x8x128xbf16>
    %137 = vector.shape_cast %136 : vector<1x8x128xbf16> to vector<8x128xbf16>
    %138 = arith.extf %137 : vector<8x128xbf16> to vector<8x128xf32>
    %c0_91 = arith.constant 0 : index
    %c0_92 = arith.constant 0 : index
    %139 = vector.load %arg8[%c0_91, %c0_92] : memref<8x128xf32, #tpu.memory_space<vmem>>, vector<8x128xf32>
    %c0_93 = arith.constant 0 : index
    %c0_94 = arith.constant 0 : index
    %140 = vector.load %arg9[%c0_93, %c0_94] : memref<8x128xf32, #tpu.memory_space<vmem>>, vector<8x128xf32>
    %cst_95 = arith.constant 1.000000e+00 : f32
    %141 = vector.broadcast %cst_95 : f32 to vector<8x128xf32>
    %142 = arith.cmpf ogt, %140, %141 : vector<8x128xf32>
    %143 = arith.extui %142 : vector<8x128xi1> to vector<8x128xi32>
    %144 = arith.sitofp %143 : vector<8x128xi32> to vector<8x128xf32>
    %145 = arith.truncf %144 : vector<8x128xf32> to vector<8x128xbf16>
    %146 = arith.index_cast %c5_i32 : i32 to index
    %c0_96 = arith.constant 0 : index
    %c0_97 = arith.constant 0 : index
    %147 = vector.load %arg10[%146, %c0_96, %c0_97] : memref<8x8x128xbf16, #tpu.memory_space<vmem>>, vector<1x8x128xbf16>
    %148 = vector.shape_cast %147 : vector<1x8x128xbf16> to vector<8x128xbf16>
    %149 = vector.shape_cast %145 : vector<8x128xbf16> to vector<1x8x128xbf16>
    tpu.vector_store %arg10[%146, %c0_96, %c0_97], %149 {strides = array<i32>} : memref<8x8x128xbf16, #tpu.memory_space<vmem>>, vector<1x8x128xbf16>,
    %cst_98 = arith.constant 0.818730771 : f32
    %150 = vector.broadcast %cst_98 : f32 to vector<8x128xf32>
    %151 = arith.mulf %150, %139 : vector<8x128xf32>
    %152 = arith.addf %151, %138 : vector<8x128xf32>
    %c0_99 = arith.constant 0 : index
    %c0_100 = arith.constant 0 : index
    %153 = vector.load %arg8[%c0_99, %c0_100] : memref<8x128xf32, #tpu.memory_space<vmem>>, vector<8x128xf32>
    tpu.vector_store %arg8[%c0_99, %c0_100], %152 {strides = array<i32>} : memref<8x128xf32, #tpu.memory_space<vmem>>, vector<8x128xf32>,
    %cst_101 = arith.constant 0.904837429 : f32
    %154 = vector.broadcast %cst_101 : f32 to vector<8x128xf32>
    %155 = arith.mulf %154, %140 : vector<8x128xf32>
    %156 = arith.addf %155, %139 : vector<8x128xf32>
    %cst_102 = arith.constant 0.000000e+00 : f32
    %157 = vector.broadcast %cst_102 : f32 to vector<8x128xf32>
    %158 = arith.select %142, %157, %156 : vector<8x128xi1>, vector<8x128xf32>
    %c0_103 = arith.constant 0 : index
    %c0_104 = arith.constant 0 : index
    %159 = vector.load %arg9[%c0_103, %c0_104] : memref<8x128xf32, #tpu.memory_space<vmem>>, vector<8x128xf32>
    tpu.vector_store %arg9[%c0_103, %c0_104], %158 {strides = array<i32>} : memref<8x128xf32, #tpu.memory_space<vmem>>, vector<8x128xf32>,
    %c6_i32 = arith.constant 6 : i32
    %160 = arith.index_cast %c6_i32 : i32 to index
    %c0_105 = arith.constant 0 : index
    %c0_106 = arith.constant 0 : index
    %161 = vector.load %arg10[%160, %c0_105, %c0_106] : memref<8x8x128xbf16, #tpu.memory_space<vmem>>, vector<1x8x128xbf16>
    %162 = vector.shape_cast %161 : vector<1x8x128xbf16> to vector<8x128xbf16>
    %163 = arith.extf %162 : vector<8x128xbf16> to vector<8x128xf32>
    %c0_107 = arith.constant 0 : index
    %c0_108 = arith.constant 0 : index
    %164 = vector.load %arg8[%c0_107, %c0_108] : memref<8x128xf32, #tpu.memory_space<vmem>>, vector<8x128xf32>
    %c0_109 = arith.constant 0 : index
    %c0_110 = arith.constant 0 : index
    %165 = vector.load %arg9[%c0_109, %c0_110] : memref<8x128xf32, #tpu.memory_space<vmem>>, vector<8x128xf32>
    %cst_111 = arith.constant 1.000000e+00 : f32
    %166 = vector.broadcast %cst_111 : f32 to vector<8x128xf32>
    %167 = arith.cmpf ogt, %165, %166 : vector<8x128xf32>
    %168 = arith.extui %167 : vector<8x128xi1> to vector<8x128xi32>
    %169 = arith.sitofp %168 : vector<8x128xi32> to vector<8x128xf32>
    %170 = arith.truncf %169 : vector<8x128xf32> to vector<8x128xbf16>
    %171 = arith.index_cast %c6_i32 : i32 to index
    %c0_112 = arith.constant 0 : index
    %c0_113 = arith.constant 0 : index
    %172 = vector.load %arg10[%171, %c0_112, %c0_113] : memref<8x8x128xbf16, #tpu.memory_space<vmem>>, vector<1x8x128xbf16>
    %173 = vector.shape_cast %172 : vector<1x8x128xbf16> to vector<8x128xbf16>
    %174 = vector.shape_cast %170 : vector<8x128xbf16> to vector<1x8x128xbf16>
    tpu.vector_store %arg10[%171, %c0_112, %c0_113], %174 {strides = array<i32>} : memref<8x8x128xbf16, #tpu.memory_space<vmem>>, vector<1x8x128xbf16>,
    %cst_114 = arith.constant 0.818730771 : f32
    %175 = vector.broadcast %cst_114 : f32 to vector<8x128xf32>
    %176 = arith.mulf %175, %164 : vector<8x128xf32>
    %177 = arith.addf %176, %163 : vector<8x128xf32>
    %c0_115 = arith.constant 0 : index
    %c0_116 = arith.constant 0 : index
    %178 = vector.load %arg8[%c0_115, %c0_116] : memref<8x128xf32, #tpu.memory_space<vmem>>, vector<8x128xf32>
    tpu.vector_store %arg8[%c0_115, %c0_116], %177 {strides = array<i32>} : memref<8x128xf32, #tpu.memory_space<vmem>>, vector<8x128xf32>,
    %cst_117 = arith.constant 0.904837429 : f32
    %179 = vector.broadcast %cst_117 : f32 to vector<8x128xf32>
    %180 = arith.mulf %179, %165 : vector<8x128xf32>
    %181 = arith.addf %180, %164 : vector<8x128xf32>
    %cst_118 = arith.constant 0.000000e+00 : f32
    %182 = vector.broadcast %cst_118 : f32 to vector<8x128xf32>
    %183 = arith.select %167, %182, %181 : vector<8x128xi1>, vector<8x128xf32>
    %c0_119 = arith.constant 0 : index
    %c0_120 = arith.constant 0 : index
    %184 = vector.load %arg9[%c0_119, %c0_120] : memref<8x128xf32, #tpu.memory_space<vmem>>, vector<8x128xf32>
    tpu.vector_store %arg9[%c0_119, %c0_120], %183 {strides = array<i32>} : memref<8x128xf32, #tpu.memory_space<vmem>>, vector<8x128xf32>,
    %c7_i32 = arith.constant 7 : i32
    %185 = arith.index_cast %c7_i32 : i32 to index
    %c0_121 = arith.constant 0 : index
    %c0_122 = arith.constant 0 : index
    %186 = vector.load %arg10[%185, %c0_121, %c0_122] : memref<8x8x128xbf16, #tpu.memory_space<vmem>>, vector<1x8x128xbf16>
    %187 = vector.shape_cast %186 : vector<1x8x128xbf16> to vector<8x128xbf16>
    %188 = arith.extf %187 : vector<8x128xbf16> to vector<8x128xf32>
    %c0_123 = arith.constant 0 : index
    %c0_124 = arith.constant 0 : index
    %189 = vector.load %arg8[%c0_123, %c0_124] : memref<8x128xf32, #tpu.memory_space<vmem>>, vector<8x128xf32>
    %c0_125 = arith.constant 0 : index
    %c0_126 = arith.constant 0 : index
    %190 = vector.load %arg9[%c0_125, %c0_126] : memref<8x128xf32, #tpu.memory_space<vmem>>, vector<8x128xf32>
    %cst_127 = arith.constant 1.000000e+00 : f32
    %191 = vector.broadcast %cst_127 : f32 to vector<8x128xf32>
    %192 = arith.cmpf ogt, %190, %191 : vector<8x128xf32>
    %193 = arith.extui %192 : vector<8x128xi1> to vector<8x128xi32>
    %194 = arith.sitofp %193 : vector<8x128xi32> to vector<8x128xf32>
    %195 = arith.truncf %194 : vector<8x128xf32> to vector<8x128xbf16>
    %196 = arith.index_cast %c7_i32 : i32 to index
    %c0_128 = arith.constant 0 : index
    %c0_129 = arith.constant 0 : index
    %197 = vector.load %arg10[%196, %c0_128, %c0_129] : memref<8x8x128xbf16, #tpu.memory_space<vmem>>, vector<1x8x128xbf16>
    %198 = vector.shape_cast %197 : vector<1x8x128xbf16> to vector<8x128xbf16>
    %199 = vector.shape_cast %195 : vector<8x128xbf16> to vector<1x8x128xbf16>
    tpu.vector_store %arg10[%196, %c0_128, %c0_129], %199 {strides = array<i32>} : memref<8x8x128xbf16, #tpu.memory_space<vmem>>, vector<1x8x128xbf16>,
    %cst_130 = arith.constant 0.818730771 : f32
    %200 = vector.broadcast %cst_130 : f32 to vector<8x128xf32>
    %201 = arith.mulf %200, %189 : vector<8x128xf32>
    %202 = arith.addf %201, %188 : vector<8x128xf32>
    %c0_131 = arith.constant 0 : index
    %c0_132 = arith.constant 0 : index
    %203 = vector.load %arg8[%c0_131, %c0_132] : memref<8x128xf32, #tpu.memory_space<vmem>>, vector<8x128xf32>
    tpu.vector_store %arg8[%c0_131, %c0_132], %202 {strides = array<i32>} : memref<8x128xf32, #tpu.memory_space<vmem>>, vector<8x128xf32>,
    %cst_133 = arith.constant 0.904837429 : f32
    %204 = vector.broadcast %cst_133 : f32 to vector<8x128xf32>
    %205 = arith.mulf %204, %190 : vector<8x128xf32>
    %206 = arith.addf %205, %189 : vector<8x128xf32>
    %cst_134 = arith.constant 0.000000e+00 : f32
    %207 = vector.broadcast %cst_134 : f32 to vector<8x128xf32>
    %208 = arith.select %192, %207, %206 : vector<8x128xi1>, vector<8x128xf32>
    %c0_135 = arith.constant 0 : index
    %c0_136 = arith.constant 0 : index
    %209 = vector.load %arg9[%c0_135, %c0_136] : memref<8x128xf32, #tpu.memory_space<vmem>>, vector<8x128xf32>
    tpu.vector_store %arg9[%c0_135, %c0_136], %208 {strides = array<i32>} : memref<8x128xf32, #tpu.memory_space<vmem>>, vector<8x128xf32>,
    %c8_i32 = arith.constant 8 : i32
    %c0_137 = arith.constant 0 : index
    %c0_138 = arith.constant 0 : index
    %c0_139 = arith.constant 0 : index
    %210 = vector.load %arg10[%c0_137, %c0_138, %c0_139] : memref<8x8x128xbf16, #tpu.memory_space<vmem>>, vector<8x8x128xbf16>
    %211 = vector.shape_cast %210 : vector<8x8x128xbf16> to vector<64x128xbf16>
    %c0_140 = arith.constant 0 : index
    %c0_141 = arith.constant 0 : index
    %212 = vector.load %arg4[%c0_140, %c0_141] : memref<128x128xbf16, #tpu.memory_space<vmem>>, vector<128x128xbf16>
    %cst_142 = arith.constant dense<0.000000e+00> : vector<64x128xf32>
    %213 = tpu.matmul %211, %212, %cst_142 {dimension_numbers = #tpu.dot_dimension_numbers<[1], [0], [0], [1], [0, 0, 1, 1], [], []>} : vector<64x128xbf16>, vector<128x128xbf16>, vector<64x128xf32> -> vector<64x128xf32>
    %214 = vector.shape_cast %213 : vector<64x128xf32> to vector<8x8x128xf32>
    %215 = arith.truncf %214 : vector<8x8x128xf32> to vector<8x8x128xbf16>
    %c0_143 = arith.constant 0 : index
    %c0_144 = arith.constant 0 : index
    %c0_145 = arith.constant 0 : index
    %216 = vector.load %arg13[%c0_143, %c0_144, %c0_145] : memref<8x8x128xbf16, #tpu.memory_space<vmem>>, vector<8x8x128xbf16>
    tpu.vector_store %arg13[%c0_143, %c0_144, %c0_145], %215 {strides = array<i32>} : memref<8x8x128xbf16, #tpu.memory_space<vmem>>, vector<8x8x128xbf16>,
    %c0_146 = arith.constant 0 : index
    %c0_147 = arith.constant 0 : index
    %217 = vector.load %arg5[%c0_146, %c0_147] : memref<128x128xbf16, #tpu.memory_space<vmem>>, vector<128x128xbf16>
    %c0_i32_148 = arith.constant 0 : i32
    %218 = arith.index_cast %c0_i32_148 : i32 to index
    %c0_149 = arith.constant 0 : index
    %c0_150 = arith.constant 0 : index
    %219 = vector.load %arg13[%218, %c0_149, %c0_150] : memref<8x8x128xbf16, #tpu.memory_space<vmem>>, vector<1x8x128xbf16>
    %220 = vector.shape_cast %219 : vector<1x8x128xbf16> to vector<8x128xbf16>
    %221 = arith.extf %220 : vector<8x128xbf16> to vector<8x128xf32>
    %c0_151 = arith.constant 0 : index
    %c0_152 = arith.constant 0 : index
    %222 = vector.load %arg11[%c0_151, %c0_152] : memref<8x128xf32, #tpu.memory_space<vmem>>, vector<8x128xf32>
    %c0_153 = arith.constant 0 : index
    %c0_154 = arith.constant 0 : index
    %223 = vector.load %arg12[%c0_153, %c0_154] : memref<8x128xf32, #tpu.memory_space<vmem>>, vector<8x128xf32>
    %cst_155 = arith.constant 1.000000e+00 : f32
    %224 = vector.broadcast %cst_155 : f32 to vector<8x128xf32>
    %225 = arith.cmpf ogt, %223, %224 : vector<8x128xf32>
    %226 = arith.extui %225 : vector<8x128xi1> to vector<8x128xi32>
    %227 = arith.sitofp %226 : vector<8x128xi32> to vector<8x128xf32>
    %228 = arith.truncf %227 : vector<8x128xf32> to vector<8x128xbf16>
    %229 = arith.index_cast %c0_i32_148 : i32 to index
    %c0_156 = arith.constant 0 : index
    %c0_157 = arith.constant 0 : index
    %230 = vector.load %arg13[%229, %c0_156, %c0_157] : memref<8x8x128xbf16, #tpu.memory_space<vmem>>, vector<1x8x128xbf16>
    %231 = vector.shape_cast %230 : vector<1x8x128xbf16> to vector<8x128xbf16>
    %232 = vector.shape_cast %228 : vector<8x128xbf16> to vector<1x8x128xbf16>
    tpu.vector_store %arg13[%229, %c0_156, %c0_157], %232 {strides = array<i32>} : memref<8x8x128xbf16, #tpu.memory_space<vmem>>, vector<1x8x128xbf16>,
    %cst_158 = arith.constant dense<0.000000e+00> : vector<8x128xf32>
    %233 = tpu.matmul %228, %217, %cst_158 {dimension_numbers = #tpu.dot_dimension_numbers<[1], [0], [0], [1], [0, 0, 1, 1], [], []>} : vector<8x128xbf16>, vector<128x128xbf16>, vector<8x128xf32> -> vector<8x128xf32>
    %cst_159 = arith.constant 0.818730771 : f32
    %234 = vector.broadcast %cst_159 : f32 to vector<8x128xf32>
    %235 = arith.mulf %234, %222 : vector<8x128xf32>
    %236 = arith.addf %235, %221 : vector<8x128xf32>
    %237 = arith.addf %236, %233 : vector<8x128xf32>
    %c0_160 = arith.constant 0 : index
    %c0_161 = arith.constant 0 : index
    %238 = vector.load %arg11[%c0_160, %c0_161] : memref<8x128xf32, #tpu.memory_space<vmem>>, vector<8x128xf32>
    tpu.vector_store %arg11[%c0_160, %c0_161], %237 {strides = array<i32>} : memref<8x128xf32, #tpu.memory_space<vmem>>, vector<8x128xf32>,
    %cst_162 = arith.constant 0.904837429 : f32
    %239 = vector.broadcast %cst_162 : f32 to vector<8x128xf32>
    %240 = arith.mulf %239, %223 : vector<8x128xf32>
    %241 = arith.addf %240, %222 : vector<8x128xf32>
    %cst_163 = arith.constant 0.000000e+00 : f32
    %242 = vector.broadcast %cst_163 : f32 to vector<8x128xf32>
    %243 = arith.select %225, %242, %241 : vector<8x128xi1>, vector<8x128xf32>
    %c0_164 = arith.constant 0 : index
    %c0_165 = arith.constant 0 : index
    %244 = vector.load %arg12[%c0_164, %c0_165] : memref<8x128xf32, #tpu.memory_space<vmem>>, vector<8x128xf32>
    tpu.vector_store %arg12[%c0_164, %c0_165], %243 {strides = array<i32>} : memref<8x128xf32, #tpu.memory_space<vmem>>, vector<8x128xf32>,
    %c1_i32_166 = arith.constant 1 : i32
    %245 = arith.index_cast %c1_i32_166 : i32 to index
    %c0_167 = arith.constant 0 : index
    %c0_168 = arith.constant 0 : index
    %246 = vector.load %arg13[%245, %c0_167, %c0_168] : memref<8x8x128xbf16, #tpu.memory_space<vmem>>, vector<1x8x128xbf16>
    %247 = vector.shape_cast %246 : vector<1x8x128xbf16> to vector<8x128xbf16>
    %248 = arith.extf %247 : vector<8x128xbf16> to vector<8x128xf32>
    %c0_169 = arith.constant 0 : index
    %c0_170 = arith.constant 0 : index
    %249 = vector.load %arg11[%c0_169, %c0_170] : memref<8x128xf32, #tpu.memory_space<vmem>>, vector<8x128xf32>
    %c0_171 = arith.constant 0 : index
    %c0_172 = arith.constant 0 : index
    %250 = vector.load %arg12[%c0_171, %c0_172] : memref<8x128xf32, #tpu.memory_space<vmem>>, vector<8x128xf32>
    %cst_173 = arith.constant 1.000000e+00 : f32
    %251 = vector.broadcast %cst_173 : f32 to vector<8x128xf32>
    %252 = arith.cmpf ogt, %250, %251 : vector<8x128xf32>
    %253 = arith.extui %252 : vector<8x128xi1> to vector<8x128xi32>
    %254 = arith.sitofp %253 : vector<8x128xi32> to vector<8x128xf32>
    %255 = arith.truncf %254 : vector<8x128xf32> to vector<8x128xbf16>
    %256 = arith.index_cast %c1_i32_166 : i32 to index
    %c0_174 = arith.constant 0 : index
    %c0_175 = arith.constant 0 : index
    %257 = vector.load %arg13[%256, %c0_174, %c0_175] : memref<8x8x128xbf16, #tpu.memory_space<vmem>>, vector<1x8x128xbf16>
    %258 = vector.shape_cast %257 : vector<1x8x128xbf16> to vector<8x128xbf16>
    %259 = vector.shape_cast %255 : vector<8x128xbf16> to vector<1x8x128xbf16>
    tpu.vector_store %arg13[%256, %c0_174, %c0_175], %259 {strides = array<i32>} : memref<8x8x128xbf16, #tpu.memory_space<vmem>>, vector<1x8x128xbf16>,
    %cst_176 = arith.constant dense<0.000000e+00> : vector<8x128xf32>
    %260 = tpu.matmul %255, %217, %cst_176 {dimension_numbers = #tpu.dot_dimension_numbers<[1], [0], [0], [1], [0, 0, 1, 1], [], []>} : vector<8x128xbf16>, vector<128x128xbf16>, vector<8x128xf32> -> vector<8x128xf32>
    %cst_177 = arith.constant 0.818730771 : f32
    %261 = vector.broadcast %cst_177 : f32 to vector<8x128xf32>
    %262 = arith.mulf %261, %249 : vector<8x128xf32>
    %263 = arith.addf %262, %248 : vector<8x128xf32>
    %264 = arith.addf %263, %260 : vector<8x128xf32>
    %c0_178 = arith.constant 0 : index
    %c0_179 = arith.constant 0 : index
    %265 = vector.load %arg11[%c0_178, %c0_179] : memref<8x128xf32, #tpu.memory_space<vmem>>, vector<8x128xf32>
    tpu.vector_store %arg11[%c0_178, %c0_179], %264 {strides = array<i32>} : memref<8x128xf32, #tpu.memory_space<vmem>>, vector<8x128xf32>,
    %cst_180 = arith.constant 0.904837429 : f32
    %266 = vector.broadcast %cst_180 : f32 to vector<8x128xf32>
    %267 = arith.mulf %266, %250 : vector<8x128xf32>
    %268 = arith.addf %267, %249 : vector<8x128xf32>
    %cst_181 = arith.constant 0.000000e+00 : f32
    %269 = vector.broadcast %cst_181 : f32 to vector<8x128xf32>
    %270 = arith.select %252, %269, %268 : vector<8x128xi1>, vector<8x128xf32>
    %c0_182 = arith.constant 0 : index
    %c0_183 = arith.constant 0 : index
    %271 = vector.load %arg12[%c0_182, %c0_183] : memref<8x128xf32, #tpu.memory_space<vmem>>, vector<8x128xf32>
    tpu.vector_store %arg12[%c0_182, %c0_183], %270 {strides = array<i32>} : memref<8x128xf32, #tpu.memory_space<vmem>>, vector<8x128xf32>,
    %c2_i32_184 = arith.constant 2 : i32
    %272 = arith.index_cast %c2_i32_184 : i32 to index
    %c0_185 = arith.constant 0 : index
    %c0_186 = arith.constant 0 : index
    %273 = vector.load %arg13[%272, %c0_185, %c0_186] : memref<8x8x128xbf16, #tpu.memory_space<vmem>>, vector<1x8x128xbf16>
    %274 = vector.shape_cast %273 : vector<1x8x128xbf16> to vector<8x128xbf16>
    %275 = arith.extf %274 : vector<8x128xbf16> to vector<8x128xf32>
    %c0_187 = arith.constant 0 : index
    %c0_188 = arith.constant 0 : index
    %276 = vector.load %arg11[%c0_187, %c0_188] : memref<8x128xf32, #tpu.memory_space<vmem>>, vector<8x128xf32>
    %c0_189 = arith.constant 0 : index
    %c0_190 = arith.constant 0 : index
    %277 = vector.load %arg12[%c0_189, %c0_190] : memref<8x128xf32, #tpu.memory_space<vmem>>, vector<8x128xf32>
    %cst_191 = arith.constant 1.000000e+00 : f32
    %278 = vector.broadcast %cst_191 : f32 to vector<8x128xf32>
    %279 = arith.cmpf ogt, %277, %278 : vector<8x128xf32>
    %280 = arith.extui %279 : vector<8x128xi1> to vector<8x128xi32>
    %281 = arith.sitofp %280 : vector<8x128xi32> to vector<8x128xf32>
    %282 = arith.truncf %281 : vector<8x128xf32> to vector<8x128xbf16>
    %283 = arith.index_cast %c2_i32_184 : i32 to index
    %c0_192 = arith.constant 0 : index
    %c0_193 = arith.constant 0 : index
    %284 = vector.load %arg13[%283, %c0_192, %c0_193] : memref<8x8x128xbf16, #tpu.memory_space<vmem>>, vector<1x8x128xbf16>
    %285 = vector.shape_cast %284 : vector<1x8x128xbf16> to vector<8x128xbf16>
    %286 = vector.shape_cast %282 : vector<8x128xbf16> to vector<1x8x128xbf16>
    tpu.vector_store %arg13[%283, %c0_192, %c0_193], %286 {strides = array<i32>} : memref<8x8x128xbf16, #tpu.memory_space<vmem>>, vector<1x8x128xbf16>,
    %cst_194 = arith.constant dense<0.000000e+00> : vector<8x128xf32>
    %287 = tpu.matmul %282, %217, %cst_194 {dimension_numbers = #tpu.dot_dimension_numbers<[1], [0], [0], [1], [0, 0, 1, 1], [], []>} : vector<8x128xbf16>, vector<128x128xbf16>, vector<8x128xf32> -> vector<8x128xf32>
    %cst_195 = arith.constant 0.818730771 : f32
    %288 = vector.broadcast %cst_195 : f32 to vector<8x128xf32>
    %289 = arith.mulf %288, %276 : vector<8x128xf32>
    %290 = arith.addf %289, %275 : vector<8x128xf32>
    %291 = arith.addf %290, %287 : vector<8x128xf32>
    %c0_196 = arith.constant 0 : index
    %c0_197 = arith.constant 0 : index
    %292 = vector.load %arg11[%c0_196, %c0_197] : memref<8x128xf32, #tpu.memory_space<vmem>>, vector<8x128xf32>
    tpu.vector_store %arg11[%c0_196, %c0_197], %291 {strides = array<i32>} : memref<8x128xf32, #tpu.memory_space<vmem>>, vector<8x128xf32>,
    %cst_198 = arith.constant 0.904837429 : f32
    %293 = vector.broadcast %cst_198 : f32 to vector<8x128xf32>
    %294 = arith.mulf %293, %277 : vector<8x128xf32>
    %295 = arith.addf %294, %276 : vector<8x128xf32>
    %cst_199 = arith.constant 0.000000e+00 : f32
    %296 = vector.broadcast %cst_199 : f32 to vector<8x128xf32>
    %297 = arith.select %279, %296, %295 : vector<8x128xi1>, vector<8x128xf32>
    %c0_200 = arith.constant 0 : index
    %c0_201 = arith.constant 0 : index
    %298 = vector.load %arg12[%c0_200, %c0_201] : memref<8x128xf32, #tpu.memory_space<vmem>>, vector<8x128xf32>
    tpu.vector_store %arg12[%c0_200, %c0_201], %297 {strides = array<i32>} : memref<8x128xf32, #tpu.memory_space<vmem>>, vector<8x128xf32>,
    %c3_i32_202 = arith.constant 3 : i32
    %299 = arith.index_cast %c3_i32_202 : i32 to index
    %c0_203 = arith.constant 0 : index
    %c0_204 = arith.constant 0 : index
    %300 = vector.load %arg13[%299, %c0_203, %c0_204] : memref<8x8x128xbf16, #tpu.memory_space<vmem>>, vector<1x8x128xbf16>
    %301 = vector.shape_cast %300 : vector<1x8x128xbf16> to vector<8x128xbf16>
    %302 = arith.extf %301 : vector<8x128xbf16> to vector<8x128xf32>
    %c0_205 = arith.constant 0 : index
    %c0_206 = arith.constant 0 : index
    %303 = vector.load %arg11[%c0_205, %c0_206] : memref<8x128xf32, #tpu.memory_space<vmem>>, vector<8x128xf32>
    %c0_207 = arith.constant 0 : index
    %c0_208 = arith.constant 0 : index
    %304 = vector.load %arg12[%c0_207, %c0_208] : memref<8x128xf32, #tpu.memory_space<vmem>>, vector<8x128xf32>
    %cst_209 = arith.constant 1.000000e+00 : f32
    %305 = vector.broadcast %cst_209 : f32 to vector<8x128xf32>
    %306 = arith.cmpf ogt, %304, %305 : vector<8x128xf32>
    %307 = arith.extui %306 : vector<8x128xi1> to vector<8x128xi32>
    %308 = arith.sitofp %307 : vector<8x128xi32> to vector<8x128xf32>
    %309 = arith.truncf %308 : vector<8x128xf32> to vector<8x128xbf16>
    %310 = arith.index_cast %c3_i32_202 : i32 to index
    %c0_210 = arith.constant 0 : index
    %c0_211 = arith.constant 0 : index
    %311 = vector.load %arg13[%310, %c0_210, %c0_211] : memref<8x8x128xbf16, #tpu.memory_space<vmem>>, vector<1x8x128xbf16>
    %312 = vector.shape_cast %311 : vector<1x8x128xbf16> to vector<8x128xbf16>
    %313 = vector.shape_cast %309 : vector<8x128xbf16> to vector<1x8x128xbf16>
    tpu.vector_store %arg13[%310, %c0_210, %c0_211], %313 {strides = array<i32>} : memref<8x8x128xbf16, #tpu.memory_space<vmem>>, vector<1x8x128xbf16>,
    %cst_212 = arith.constant dense<0.000000e+00> : vector<8x128xf32>
    %314 = tpu.matmul %309, %217, %cst_212 {dimension_numbers = #tpu.dot_dimension_numbers<[1], [0], [0], [1], [0, 0, 1, 1], [], []>} : vector<8x128xbf16>, vector<128x128xbf16>, vector<8x128xf32> -> vector<8x128xf32>
    %cst_213 = arith.constant 0.818730771 : f32
    %315 = vector.broadcast %cst_213 : f32 to vector<8x128xf32>
    %316 = arith.mulf %315, %303 : vector<8x128xf32>
    %317 = arith.addf %316, %302 : vector<8x128xf32>
    %318 = arith.addf %317, %314 : vector<8x128xf32>
    %c0_214 = arith.constant 0 : index
    %c0_215 = arith.constant 0 : index
    %319 = vector.load %arg11[%c0_214, %c0_215] : memref<8x128xf32, #tpu.memory_space<vmem>>, vector<8x128xf32>
    tpu.vector_store %arg11[%c0_214, %c0_215], %318 {strides = array<i32>} : memref<8x128xf32, #tpu.memory_space<vmem>>, vector<8x128xf32>,
    %cst_216 = arith.constant 0.904837429 : f32
    %320 = vector.broadcast %cst_216 : f32 to vector<8x128xf32>
    %321 = arith.mulf %320, %304 : vector<8x128xf32>
    %322 = arith.addf %321, %303 : vector<8x128xf32>
    %cst_217 = arith.constant 0.000000e+00 : f32
    %323 = vector.broadcast %cst_217 : f32 to vector<8x128xf32>
    %324 = arith.select %306, %323, %322 : vector<8x128xi1>, vector<8x128xf32>
    %c0_218 = arith.constant 0 : index
    %c0_219 = arith.constant 0 : index
    %325 = vector.load %arg12[%c0_218, %c0_219] : memref<8x128xf32, #tpu.memory_space<vmem>>, vector<8x128xf32>
    tpu.vector_store %arg12[%c0_218, %c0_219], %324 {strides = array<i32>} : memref<8x128xf32, #tpu.memory_space<vmem>>, vector<8x128xf32>,
    %c4_i32_220 = arith.constant 4 : i32
    %326 = arith.index_cast %c4_i32_220 : i32 to index
    %c0_221 = arith.constant 0 : index
    %c0_222 = arith.constant 0 : index
    %327 = vector.load %arg13[%326, %c0_221, %c0_222] : memref<8x8x128xbf16, #tpu.memory_space<vmem>>, vector<1x8x128xbf16>
    %328 = vector.shape_cast %327 : vector<1x8x128xbf16> to vector<8x128xbf16>
    %329 = arith.extf %328 : vector<8x128xbf16> to vector<8x128xf32>
    %c0_223 = arith.constant 0 : index
    %c0_224 = arith.constant 0 : index
    %330 = vector.load %arg11[%c0_223, %c0_224] : memref<8x128xf32, #tpu.memory_space<vmem>>, vector<8x128xf32>
    %c0_225 = arith.constant 0 : index
    %c0_226 = arith.constant 0 : index
    %331 = vector.load %arg12[%c0_225, %c0_226] : memref<8x128xf32, #tpu.memory_space<vmem>>, vector<8x128xf32>
    %cst_227 = arith.constant 1.000000e+00 : f32
    %332 = vector.broadcast %cst_227 : f32 to vector<8x128xf32>
    %333 = arith.cmpf ogt, %331, %332 : vector<8x128xf32>
    %334 = arith.extui %333 : vector<8x128xi1> to vector<8x128xi32>
    %335 = arith.sitofp %334 : vector<8x128xi32> to vector<8x128xf32>
    %336 = arith.truncf %335 : vector<8x128xf32> to vector<8x128xbf16>
    %337 = arith.index_cast %c4_i32_220 : i32 to index
    %c0_228 = arith.constant 0 : index
    %c0_229 = arith.constant 0 : index
    %338 = vector.load %arg13[%337, %c0_228, %c0_229] : memref<8x8x128xbf16, #tpu.memory_space<vmem>>, vector<1x8x128xbf16>
    %339 = vector.shape_cast %338 : vector<1x8x128xbf16> to vector<8x128xbf16>
    %340 = vector.shape_cast %336 : vector<8x128xbf16> to vector<1x8x128xbf16>
    tpu.vector_store %arg13[%337, %c0_228, %c0_229], %340 {strides = array<i32>} : memref<8x8x128xbf16, #tpu.memory_space<vmem>>, vector<1x8x128xbf16>,
    %cst_230 = arith.constant dense<0.000000e+00> : vector<8x128xf32>
    %341 = tpu.matmul %336, %217, %cst_230 {dimension_numbers = #tpu.dot_dimension_numbers<[1], [0], [0], [1], [0, 0, 1, 1], [], []>} : vector<8x128xbf16>, vector<128x128xbf16>, vector<8x128xf32> -> vector<8x128xf32>
    %cst_231 = arith.constant 0.818730771 : f32
    %342 = vector.broadcast %cst_231 : f32 to vector<8x128xf32>
    %343 = arith.mulf %342, %330 : vector<8x128xf32>
    %344 = arith.addf %343, %329 : vector<8x128xf32>
    %345 = arith.addf %344, %341 : vector<8x128xf32>
    %c0_232 = arith.constant 0 : index
    %c0_233 = arith.constant 0 : index
    %346 = vector.load %arg11[%c0_232, %c0_233] : memref<8x128xf32, #tpu.memory_space<vmem>>, vector<8x128xf32>
    tpu.vector_store %arg11[%c0_232, %c0_233], %345 {strides = array<i32>} : memref<8x128xf32, #tpu.memory_space<vmem>>, vector<8x128xf32>,
    %cst_234 = arith.constant 0.904837429 : f32
    %347 = vector.broadcast %cst_234 : f32 to vector<8x128xf32>
    %348 = arith.mulf %347, %331 : vector<8x128xf32>
    %349 = arith.addf %348, %330 : vector<8x128xf32>
    %cst_235 = arith.constant 0.000000e+00 : f32
    %350 = vector.broadcast %cst_235 : f32 to vector<8x128xf32>
    %351 = arith.select %333, %350, %349 : vector<8x128xi1>, vector<8x128xf32>
    %c0_236 = arith.constant 0 : index
    %c0_237 = arith.constant 0 : index
    %352 = vector.load %arg12[%c0_236, %c0_237] : memref<8x128xf32, #tpu.memory_space<vmem>>, vector<8x128xf32>
    tpu.vector_store %arg12[%c0_236, %c0_237], %351 {strides = array<i32>} : memref<8x128xf32, #tpu.memory_space<vmem>>, vector<8x128xf32>,
    %c5_i32_238 = arith.constant 5 : i32
    %353 = arith.index_cast %c5_i32_238 : i32 to index
    %c0_239 = arith.constant 0 : index
    %c0_240 = arith.constant 0 : index
    %354 = vector.load %arg13[%353, %c0_239, %c0_240] : memref<8x8x128xbf16, #tpu.memory_space<vmem>>, vector<1x8x128xbf16>
    %355 = vector.shape_cast %354 : vector<1x8x128xbf16> to vector<8x128xbf16>
    %356 = arith.extf %355 : vector<8x128xbf16> to vector<8x128xf32>
    %c0_241 = arith.constant 0 : index
    %c0_242 = arith.constant 0 : index
    %357 = vector.load %arg11[%c0_241, %c0_242] : memref<8x128xf32, #tpu.memory_space<vmem>>, vector<8x128xf32>
    %c0_243 = arith.constant 0 : index
    %c0_244 = arith.constant 0 : index
    %358 = vector.load %arg12[%c0_243, %c0_244] : memref<8x128xf32, #tpu.memory_space<vmem>>, vector<8x128xf32>
    %cst_245 = arith.constant 1.000000e+00 : f32
    %359 = vector.broadcast %cst_245 : f32 to vector<8x128xf32>
    %360 = arith.cmpf ogt, %358, %359 : vector<8x128xf32>
    %361 = arith.extui %360 : vector<8x128xi1> to vector<8x128xi32>
    %362 = arith.sitofp %361 : vector<8x128xi32> to vector<8x128xf32>
    %363 = arith.truncf %362 : vector<8x128xf32> to vector<8x128xbf16>
    %364 = arith.index_cast %c5_i32_238 : i32 to index
    %c0_246 = arith.constant 0 : index
    %c0_247 = arith.constant 0 : index
    %365 = vector.load %arg13[%364, %c0_246, %c0_247] : memref<8x8x128xbf16, #tpu.memory_space<vmem>>, vector<1x8x128xbf16>
    %366 = vector.shape_cast %365 : vector<1x8x128xbf16> to vector<8x128xbf16>
    %367 = vector.shape_cast %363 : vector<8x128xbf16> to vector<1x8x128xbf16>
    tpu.vector_store %arg13[%364, %c0_246, %c0_247], %367 {strides = array<i32>} : memref<8x8x128xbf16, #tpu.memory_space<vmem>>, vector<1x8x128xbf16>,
    %cst_248 = arith.constant dense<0.000000e+00> : vector<8x128xf32>
    %368 = tpu.matmul %363, %217, %cst_248 {dimension_numbers = #tpu.dot_dimension_numbers<[1], [0], [0], [1], [0, 0, 1, 1], [], []>} : vector<8x128xbf16>, vector<128x128xbf16>, vector<8x128xf32> -> vector<8x128xf32>
    %cst_249 = arith.constant 0.818730771 : f32
    %369 = vector.broadcast %cst_249 : f32 to vector<8x128xf32>
    %370 = arith.mulf %369, %357 : vector<8x128xf32>
    %371 = arith.addf %370, %356 : vector<8x128xf32>
    %372 = arith.addf %371, %368 : vector<8x128xf32>
    %c0_250 = arith.constant 0 : index
    %c0_251 = arith.constant 0 : index
    %373 = vector.load %arg11[%c0_250, %c0_251] : memref<8x128xf32, #tpu.memory_space<vmem>>, vector<8x128xf32>
    tpu.vector_store %arg11[%c0_250, %c0_251], %372 {strides = array<i32>} : memref<8x128xf32, #tpu.memory_space<vmem>>, vector<8x128xf32>,
    %cst_252 = arith.constant 0.904837429 : f32
    %374 = vector.broadcast %cst_252 : f32 to vector<8x128xf32>
    %375 = arith.mulf %374, %358 : vector<8x128xf32>
    %376 = arith.addf %375, %357 : vector<8x128xf32>
    %cst_253 = arith.constant 0.000000e+00 : f32
    %377 = vector.broadcast %cst_253 : f32 to vector<8x128xf32>
    %378 = arith.select %360, %377, %376 : vector<8x128xi1>, vector<8x128xf32>
    %c0_254 = arith.constant 0 : index
    %c0_255 = arith.constant 0 : index
    %379 = vector.load %arg12[%c0_254, %c0_255] : memref<8x128xf32, #tpu.memory_space<vmem>>, vector<8x128xf32>
    tpu.vector_store %arg12[%c0_254, %c0_255], %378 {strides = array<i32>} : memref<8x128xf32, #tpu.memory_space<vmem>>, vector<8x128xf32>,
    %c6_i32_256 = arith.constant 6 : i32
    %380 = arith.index_cast %c6_i32_256 : i32 to index
    %c0_257 = arith.constant 0 : index
    %c0_258 = arith.constant 0 : index
    %381 = vector.load %arg13[%380, %c0_257, %c0_258] : memref<8x8x128xbf16, #tpu.memory_space<vmem>>, vector<1x8x128xbf16>
    %382 = vector.shape_cast %381 : vector<1x8x128xbf16> to vector<8x128xbf16>
    %383 = arith.extf %382 : vector<8x128xbf16> to vector<8x128xf32>
    %c0_259 = arith.constant 0 : index
    %c0_260 = arith.constant 0 : index
    %384 = vector.load %arg11[%c0_259, %c0_260] : memref<8x128xf32, #tpu.memory_space<vmem>>, vector<8x128xf32>
    %c0_261 = arith.constant 0 : index
    %c0_262 = arith.constant 0 : index
    %385 = vector.load %arg12[%c0_261, %c0_262] : memref<8x128xf32, #tpu.memory_space<vmem>>, vector<8x128xf32>
    %cst_263 = arith.constant 1.000000e+00 : f32
    %386 = vector.broadcast %cst_263 : f32 to vector<8x128xf32>
    %387 = arith.cmpf ogt, %385, %386 : vector<8x128xf32>
    %388 = arith.extui %387 : vector<8x128xi1> to vector<8x128xi32>
    %389 = arith.sitofp %388 : vector<8x128xi32> to vector<8x128xf32>
    %390 = arith.truncf %389 : vector<8x128xf32> to vector<8x128xbf16>
    %391 = arith.index_cast %c6_i32_256 : i32 to index
    %c0_264 = arith.constant 0 : index
    %c0_265 = arith.constant 0 : index
    %392 = vector.load %arg13[%391, %c0_264, %c0_265] : memref<8x8x128xbf16, #tpu.memory_space<vmem>>, vector<1x8x128xbf16>
    %393 = vector.shape_cast %392 : vector<1x8x128xbf16> to vector<8x128xbf16>
    %394 = vector.shape_cast %390 : vector<8x128xbf16> to vector<1x8x128xbf16>
    tpu.vector_store %arg13[%391, %c0_264, %c0_265], %394 {strides = array<i32>} : memref<8x8x128xbf16, #tpu.memory_space<vmem>>, vector<1x8x128xbf16>,
    %cst_266 = arith.constant dense<0.000000e+00> : vector<8x128xf32>
    %395 = tpu.matmul %390, %217, %cst_266 {dimension_numbers = #tpu.dot_dimension_numbers<[1], [0], [0], [1], [0, 0, 1, 1], [], []>} : vector<8x128xbf16>, vector<128x128xbf16>, vector<8x128xf32> -> vector<8x128xf32>
    %cst_267 = arith.constant 0.818730771 : f32
    %396 = vector.broadcast %cst_267 : f32 to vector<8x128xf32>
    %397 = arith.mulf %396, %384 : vector<8x128xf32>
    %398 = arith.addf %397, %383 : vector<8x128xf32>
    %399 = arith.addf %398, %395 : vector<8x128xf32>
    %c0_268 = arith.constant 0 : index
    %c0_269 = arith.constant 0 : index
    %400 = vector.load %arg11[%c0_268, %c0_269] : memref<8x128xf32, #tpu.memory_space<vmem>>, vector<8x128xf32>
    tpu.vector_store %arg11[%c0_268, %c0_269], %399 {strides = array<i32>} : memref<8x128xf32, #tpu.memory_space<vmem>>, vector<8x128xf32>,
    %cst_270 = arith.constant 0.904837429 : f32
    %401 = vector.broadcast %cst_270 : f32 to vector<8x128xf32>
    %402 = arith.mulf %401, %385 : vector<8x128xf32>
    %403 = arith.addf %402, %384 : vector<8x128xf32>
    %cst_271 = arith.constant 0.000000e+00 : f32
    %404 = vector.broadcast %cst_271 : f32 to vector<8x128xf32>
    %405 = arith.select %387, %404, %403 : vector<8x128xi1>, vector<8x128xf32>
    %c0_272 = arith.constant 0 : index
    %c0_273 = arith.constant 0 : index
    %406 = vector.load %arg12[%c0_272, %c0_273] : memref<8x128xf32, #tpu.memory_space<vmem>>, vector<8x128xf32>
    tpu.vector_store %arg12[%c0_272, %c0_273], %405 {strides = array<i32>} : memref<8x128xf32, #tpu.memory_space<vmem>>, vector<8x128xf32>,
    %c7_i32_274 = arith.constant 7 : i32
    %407 = arith.index_cast %c7_i32_274 : i32 to index
    %c0_275 = arith.constant 0 : index
    %c0_276 = arith.constant 0 : index
    %408 = vector.load %arg13[%407, %c0_275, %c0_276] : memref<8x8x128xbf16, #tpu.memory_space<vmem>>, vector<1x8x128xbf16>
    %409 = vector.shape_cast %408 : vector<1x8x128xbf16> to vector<8x128xbf16>
    %410 = arith.extf %409 : vector<8x128xbf16> to vector<8x128xf32>
    %c0_277 = arith.constant 0 : index
    %c0_278 = arith.constant 0 : index
    %411 = vector.load %arg11[%c0_277, %c0_278] : memref<8x128xf32, #tpu.memory_space<vmem>>, vector<8x128xf32>
    %c0_279 = arith.constant 0 : index
    %c0_280 = arith.constant 0 : index
    %412 = vector.load %arg12[%c0_279, %c0_280] : memref<8x128xf32, #tpu.memory_space<vmem>>, vector<8x128xf32>
    %cst_281 = arith.constant 1.000000e+00 : f32
    %413 = vector.broadcast %cst_281 : f32 to vector<8x128xf32>
    %414 = arith.cmpf ogt, %412, %413 : vector<8x128xf32>
    %415 = arith.extui %414 : vector<8x128xi1> to vector<8x128xi32>
    %416 = arith.sitofp %415 : vector<8x128xi32> to vector<8x128xf32>
    %417 = arith.truncf %416 : vector<8x128xf32> to vector<8x128xbf16>
    %418 = arith.index_cast %c7_i32_274 : i32 to index
    %c0_282 = arith.constant 0 : index
    %c0_283 = arith.constant 0 : index
    %419 = vector.load %arg13[%418, %c0_282, %c0_283] : memref<8x8x128xbf16, #tpu.memory_space<vmem>>, vector<1x8x128xbf16>
    %420 = vector.shape_cast %419 : vector<1x8x128xbf16> to vector<8x128xbf16>
    %421 = vector.shape_cast %417 : vector<8x128xbf16> to vector<1x8x128xbf16>
    tpu.vector_store %arg13[%418, %c0_282, %c0_283], %421 {strides = array<i32>} : memref<8x8x128xbf16, #tpu.memory_space<vmem>>, vector<1x8x128xbf16>,
    %cst_284 = arith.constant dense<0.000000e+00> : vector<8x128xf32>
    %422 = tpu.matmul %417, %217, %cst_284 {dimension_numbers = #tpu.dot_dimension_numbers<[1], [0], [0], [1], [0, 0, 1, 1], [], []>} : vector<8x128xbf16>, vector<128x128xbf16>, vector<8x128xf32> -> vector<8x128xf32>
    %cst_285 = arith.constant 0.818730771 : f32
    %423 = vector.broadcast %cst_285 : f32 to vector<8x128xf32>
    %424 = arith.mulf %423, %411 : vector<8x128xf32>
    %425 = arith.addf %424, %410 : vector<8x128xf32>
    %426 = arith.addf %425, %422 : vector<8x128xf32>
    %c0_286 = arith.constant 0 : index
    %c0_287 = arith.constant 0 : index
    %427 = vector.load %arg11[%c0_286, %c0_287] : memref<8x128xf32, #tpu.memory_space<vmem>>, vector<8x128xf32>
    tpu.vector_store %arg11[%c0_286, %c0_287], %426 {strides = array<i32>} : memref<8x128xf32, #tpu.memory_space<vmem>>, vector<8x128xf32>,
    %cst_288 = arith.constant 0.904837429 : f32
    %428 = vector.broadcast %cst_288 : f32 to vector<8x128xf32>
    %429 = arith.mulf %428, %412 : vector<8x128xf32>
    %430 = arith.addf %429, %411 : vector<8x128xf32>
    %cst_289 = arith.constant 0.000000e+00 : f32
    %431 = vector.broadcast %cst_289 : f32 to vector<8x128xf32>
    %432 = arith.select %414, %431, %430 : vector<8x128xi1>, vector<8x128xf32>
    %c0_290 = arith.constant 0 : index
    %c0_291 = arith.constant 0 : index
    %433 = vector.load %arg12[%c0_290, %c0_291] : memref<8x128xf32, #tpu.memory_space<vmem>>, vector<8x128xf32>
    tpu.vector_store %arg12[%c0_290, %c0_291], %432 {strides = array<i32>} : memref<8x128xf32, #tpu.memory_space<vmem>>, vector<8x128xf32>,
    %c8_i32_292 = arith.constant 8 : i32
    %c0_293 = arith.constant 0 : index
    %c0_294 = arith.constant 0 : index
    %c0_295 = arith.constant 0 : index
    %434 = vector.load %arg13[%c0_293, %c0_294, %c0_295] : memref<8x8x128xbf16, #tpu.memory_space<vmem>>, vector<8x8x128xbf16>
    %435 = vector.shape_cast %434 : vector<8x8x128xbf16> to vector<64x128xbf16>
    %c0_296 = arith.constant 0 : index
    %c0_297 = arith.constant 0 : index
    %436 = vector.load %arg6[%c0_296, %c0_297] : memref<128x128xbf16, #tpu.memory_space<vmem>>, vector<128x128xbf16>
    %cst_298 = arith.constant dense<0.000000e+00> : vector<64x128xf32>
    %437 = tpu.matmul %435, %436, %cst_298 {dimension_numbers = #tpu.dot_dimension_numbers<[1], [0], [0], [1], [0, 0, 1, 1], [], []>} : vector<64x128xbf16>, vector<128x128xbf16>, vector<64x128xf32> -> vector<64x128xf32>
    %438 = vector.shape_cast %437 : vector<64x128xf32> to vector<8x8x128xf32>
    %c0_299 = arith.constant 0 : index
    %c0_300 = arith.constant 0 : index
    %c0_301 = arith.constant 0 : index
    %439 = vector.load %arg7[%c0_299, %c0_300, %c0_301] : memref<8x8x128xf32, #tpu.memory_space<vmem>>, vector<8x8x128xf32>
    tpu.vector_store %arg7[%c0_299, %c0_300, %c0_301], %438 {strides = array<i32>} : memref<8x8x128xf32, #tpu.memory_space<vmem>>, vector<8x8x128xf32>,
    %c0_i32_302 = arith.constant 0 : i32
    %440 = arith.index_cast %c0_i32_302 : i32 to index
    %c0_303 = arith.constant 0 : index
    %c0_304 = arith.constant 0 : index
    %441 = vector.load %arg7[%440, %c0_303, %c0_304] : memref<8x8x128xf32, #tpu.memory_space<vmem>>, vector<1x8x128xf32>
    %442 = vector.shape_cast %441 : vector<1x8x128xf32> to vector<8x128xf32>
    %c0_305 = arith.constant 0 : index
    %c0_306 = arith.constant 0 : index
    %443 = vector.load %arg14[%c0_305, %c0_306] : memref<8x128xf32, #tpu.memory_space<vmem>>, vector<8x128xf32>
    %c0_307 = arith.constant 0 : index
    %c0_308 = arith.constant 0 : index
    %444 = vector.load %arg15[%c0_307, %c0_308] : memref<8x128xf32, #tpu.memory_space<vmem>>, vector<8x128xf32>
    %cst_309 = arith.constant 0.818730771 : f32
    %445 = vector.broadcast %cst_309 : f32 to vector<8x128xf32>
    %446 = arith.mulf %445, %443 : vector<8x128xf32>
    %447 = arith.addf %446, %442 : vector<8x128xf32>
    %cst_310 = arith.constant 0.904837429 : f32
    %448 = vector.broadcast %cst_310 : f32 to vector<8x128xf32>
    %449 = arith.mulf %448, %444 : vector<8x128xf32>
    %450 = arith.addf %449, %443 : vector<8x128xf32>
    %451 = arith.index_cast %c0_i32_302 : i32 to index
    %c0_311 = arith.constant 0 : index
    %c0_312 = arith.constant 0 : index
    %452 = vector.load %arg7[%451, %c0_311, %c0_312] : memref<8x8x128xf32, #tpu.memory_space<vmem>>, vector<1x8x128xf32>
    %453 = vector.shape_cast %452 : vector<1x8x128xf32> to vector<8x128xf32>
    %454 = vector.shape_cast %450 : vector<8x128xf32> to vector<1x8x128xf32>
    tpu.vector_store %arg7[%451, %c0_311, %c0_312], %454 {strides = array<i32>} : memref<8x8x128xf32, #tpu.memory_space<vmem>>, vector<1x8x128xf32>,
    %c0_313 = arith.constant 0 : index
    %c0_314 = arith.constant 0 : index
    %455 = vector.load %arg14[%c0_313, %c0_314] : memref<8x128xf32, #tpu.memory_space<vmem>>, vector<8x128xf32>
    tpu.vector_store %arg14[%c0_313, %c0_314], %447 {strides = array<i32>} : memref<8x128xf32, #tpu.memory_space<vmem>>, vector<8x128xf32>,
    %c0_315 = arith.constant 0 : index
    %c0_316 = arith.constant 0 : index
    %456 = vector.load %arg15[%c0_315, %c0_316] : memref<8x128xf32, #tpu.memory_space<vmem>>, vector<8x128xf32>
    tpu.vector_store %arg15[%c0_315, %c0_316], %450 {strides = array<i32>} : memref<8x128xf32, #tpu.memory_space<vmem>>, vector<8x128xf32>,
    %c1_i32_317 = arith.constant 1 : i32
    %457 = arith.index_cast %c1_i32_317 : i32 to index
    %c0_318 = arith.constant 0 : index
    %c0_319 = arith.constant 0 : index
    %458 = vector.load %arg7[%457, %c0_318, %c0_319] : memref<8x8x128xf32, #tpu.memory_space<vmem>>, vector<1x8x128xf32>
    %459 = vector.shape_cast %458 : vector<1x8x128xf32> to vector<8x128xf32>
    %c0_320 = arith.constant 0 : index
    %c0_321 = arith.constant 0 : index
    %460 = vector.load %arg14[%c0_320, %c0_321] : memref<8x128xf32, #tpu.memory_space<vmem>>, vector<8x128xf32>
    %c0_322 = arith.constant 0 : index
    %c0_323 = arith.constant 0 : index
    %461 = vector.load %arg15[%c0_322, %c0_323] : memref<8x128xf32, #tpu.memory_space<vmem>>, vector<8x128xf32>
    %cst_324 = arith.constant 0.818730771 : f32
    %462 = vector.broadcast %cst_324 : f32 to vector<8x128xf32>
    %463 = arith.mulf %462, %460 : vector<8x128xf32>
    %464 = arith.addf %463, %459 : vector<8x128xf32>
    %cst_325 = arith.constant 0.904837429 : f32
    %465 = vector.broadcast %cst_325 : f32 to vector<8x128xf32>
    %466 = arith.mulf %465, %461 : vector<8x128xf32>
    %467 = arith.addf %466, %460 : vector<8x128xf32>
    %468 = arith.index_cast %c1_i32_317 : i32 to index
    %c0_326 = arith.constant 0 : index
    %c0_327 = arith.constant 0 : index
    %469 = vector.load %arg7[%468, %c0_326, %c0_327] : memref<8x8x128xf32, #tpu.memory_space<vmem>>, vector<1x8x128xf32>
    %470 = vector.shape_cast %469 : vector<1x8x128xf32> to vector<8x128xf32>
    %471 = vector.shape_cast %467 : vector<8x128xf32> to vector<1x8x128xf32>
    tpu.vector_store %arg7[%468, %c0_326, %c0_327], %471 {strides = array<i32>} : memref<8x8x128xf32, #tpu.memory_space<vmem>>, vector<1x8x128xf32>,
    %c0_328 = arith.constant 0 : index
    %c0_329 = arith.constant 0 : index
    %472 = vector.load %arg14[%c0_328, %c0_329] : memref<8x128xf32, #tpu.memory_space<vmem>>, vector<8x128xf32>
    tpu.vector_store %arg14[%c0_328, %c0_329], %464 {strides = array<i32>} : memref<8x128xf32, #tpu.memory_space<vmem>>, vector<8x128xf32>,
    %c0_330 = arith.constant 0 : index
    %c0_331 = arith.constant 0 : index
    %473 = vector.load %arg15[%c0_330, %c0_331] : memref<8x128xf32, #tpu.memory_space<vmem>>, vector<8x128xf32>
    tpu.vector_store %arg15[%c0_330, %c0_331], %467 {strides = array<i32>} : memref<8x128xf32, #tpu.memory_space<vmem>>, vector<8x128xf32>,
    %c2_i32_332 = arith.constant 2 : i32
    %474 = arith.index_cast %c2_i32_332 : i32 to index
    %c0_333 = arith.constant 0 : index
    %c0_334 = arith.constant 0 : index
    %475 = vector.load %arg7[%474, %c0_333, %c0_334] : memref<8x8x128xf32, #tpu.memory_space<vmem>>, vector<1x8x128xf32>
    %476 = vector.shape_cast %475 : vector<1x8x128xf32> to vector<8x128xf32>
    %c0_335 = arith.constant 0 : index
    %c0_336 = arith.constant 0 : index
    %477 = vector.load %arg14[%c0_335, %c0_336] : memref<8x128xf32, #tpu.memory_space<vmem>>, vector<8x128xf32>
    %c0_337 = arith.constant 0 : index
    %c0_338 = arith.constant 0 : index
    %478 = vector.load %arg15[%c0_337, %c0_338] : memref<8x128xf32, #tpu.memory_space<vmem>>, vector<8x128xf32>
    %cst_339 = arith.constant 0.818730771 : f32
    %479 = vector.broadcast %cst_339 : f32 to vector<8x128xf32>
    %480 = arith.mulf %479, %477 : vector<8x128xf32>
    %481 = arith.addf %480, %476 : vector<8x128xf32>
    %cst_340 = arith.constant 0.904837429 : f32
    %482 = vector.broadcast %cst_340 : f32 to vector<8x128xf32>
    %483 = arith.mulf %482, %478 : vector<8x128xf32>
    %484 = arith.addf %483, %477 : vector<8x128xf32>
    %485 = arith.index_cast %c2_i32_332 : i32 to index
    %c0_341 = arith.constant 0 : index
    %c0_342 = arith.constant 0 : index
    %486 = vector.load %arg7[%485, %c0_341, %c0_342] : memref<8x8x128xf32, #tpu.memory_space<vmem>>, vector<1x8x128xf32>
    %487 = vector.shape_cast %486 : vector<1x8x128xf32> to vector<8x128xf32>
    %488 = vector.shape_cast %484 : vector<8x128xf32> to vector<1x8x128xf32>
    tpu.vector_store %arg7[%485, %c0_341, %c0_342], %488 {strides = array<i32>} : memref<8x8x128xf32, #tpu.memory_space<vmem>>, vector<1x8x128xf32>,
    %c0_343 = arith.constant 0 : index
    %c0_344 = arith.constant 0 : index
    %489 = vector.load %arg14[%c0_343, %c0_344] : memref<8x128xf32, #tpu.memory_space<vmem>>, vector<8x128xf32>
    tpu.vector_store %arg14[%c0_343, %c0_344], %481 {strides = array<i32>} : memref<8x128xf32, #tpu.memory_space<vmem>>, vector<8x128xf32>,
    %c0_345 = arith.constant 0 : index
    %c0_346 = arith.constant 0 : index
    %490 = vector.load %arg15[%c0_345, %c0_346] : memref<8x128xf32, #tpu.memory_space<vmem>>, vector<8x128xf32>
    tpu.vector_store %arg15[%c0_345, %c0_346], %484 {strides = array<i32>} : memref<8x128xf32, #tpu.memory_space<vmem>>, vector<8x128xf32>,
    %c3_i32_347 = arith.constant 3 : i32
    %491 = arith.index_cast %c3_i32_347 : i32 to index
    %c0_348 = arith.constant 0 : index
    %c0_349 = arith.constant 0 : index
    %492 = vector.load %arg7[%491, %c0_348, %c0_349] : memref<8x8x128xf32, #tpu.memory_space<vmem>>, vector<1x8x128xf32>
    %493 = vector.shape_cast %492 : vector<1x8x128xf32> to vector<8x128xf32>
    %c0_350 = arith.constant 0 : index
    %c0_351 = arith.constant 0 : index
    %494 = vector.load %arg14[%c0_350, %c0_351] : memref<8x128xf32, #tpu.memory_space<vmem>>, vector<8x128xf32>
    %c0_352 = arith.constant 0 : index
    %c0_353 = arith.constant 0 : index
    %495 = vector.load %arg15[%c0_352, %c0_353] : memref<8x128xf32, #tpu.memory_space<vmem>>, vector<8x128xf32>
    %cst_354 = arith.constant 0.818730771 : f32
    %496 = vector.broadcast %cst_354 : f32 to vector<8x128xf32>
    %497 = arith.mulf %496, %494 : vector<8x128xf32>
    %498 = arith.addf %497, %493 : vector<8x128xf32>
    %cst_355 = arith.constant 0.904837429 : f32
    %499 = vector.broadcast %cst_355 : f32 to vector<8x128xf32>
    %500 = arith.mulf %499, %495 : vector<8x128xf32>
    %501 = arith.addf %500, %494 : vector<8x128xf32>
    %502 = arith.index_cast %c3_i32_347 : i32 to index
    %c0_356 = arith.constant 0 : index
    %c0_357 = arith.constant 0 : index
    %503 = vector.load %arg7[%502, %c0_356, %c0_357] : memref<8x8x128xf32, #tpu.memory_space<vmem>>, vector<1x8x128xf32>
    %504 = vector.shape_cast %503 : vector<1x8x128xf32> to vector<8x128xf32>
    %505 = vector.shape_cast %501 : vector<8x128xf32> to vector<1x8x128xf32>
    tpu.vector_store %arg7[%502, %c0_356, %c0_357], %505 {strides = array<i32>} : memref<8x8x128xf32, #tpu.memory_space<vmem>>, vector<1x8x128xf32>,
    %c0_358 = arith.constant 0 : index
    %c0_359 = arith.constant 0 : index
    %506 = vector.load %arg14[%c0_358, %c0_359] : memref<8x128xf32, #tpu.memory_space<vmem>>, vector<8x128xf32>
    tpu.vector_store %arg14[%c0_358, %c0_359], %498 {strides = array<i32>} : memref<8x128xf32, #tpu.memory_space<vmem>>, vector<8x128xf32>,
    %c0_360 = arith.constant 0 : index
    %c0_361 = arith.constant 0 : index
    %507 = vector.load %arg15[%c0_360, %c0_361] : memref<8x128xf32, #tpu.memory_space<vmem>>, vector<8x128xf32>
    tpu.vector_store %arg15[%c0_360, %c0_361], %501 {strides = array<i32>} : memref<8x128xf32, #tpu.memory_space<vmem>>, vector<8x128xf32>,
    %c4_i32_362 = arith.constant 4 : i32
    %508 = arith.index_cast %c4_i32_362 : i32 to index
    %c0_363 = arith.constant 0 : index
    %c0_364 = arith.constant 0 : index
    %509 = vector.load %arg7[%508, %c0_363, %c0_364] : memref<8x8x128xf32, #tpu.memory_space<vmem>>, vector<1x8x128xf32>
    %510 = vector.shape_cast %509 : vector<1x8x128xf32> to vector<8x128xf32>
    %c0_365 = arith.constant 0 : index
    %c0_366 = arith.constant 0 : index
    %511 = vector.load %arg14[%c0_365, %c0_366] : memref<8x128xf32, #tpu.memory_space<vmem>>, vector<8x128xf32>
    %c0_367 = arith.constant 0 : index
    %c0_368 = arith.constant 0 : index
    %512 = vector.load %arg15[%c0_367, %c0_368] : memref<8x128xf32, #tpu.memory_space<vmem>>, vector<8x128xf32>
    %cst_369 = arith.constant 0.818730771 : f32
    %513 = vector.broadcast %cst_369 : f32 to vector<8x128xf32>
    %514 = arith.mulf %513, %511 : vector<8x128xf32>
    %515 = arith.addf %514, %510 : vector<8x128xf32>
    %cst_370 = arith.constant 0.904837429 : f32
    %516 = vector.broadcast %cst_370 : f32 to vector<8x128xf32>
    %517 = arith.mulf %516, %512 : vector<8x128xf32>
    %518 = arith.addf %517, %511 : vector<8x128xf32>
    %519 = arith.index_cast %c4_i32_362 : i32 to index
    %c0_371 = arith.constant 0 : index
    %c0_372 = arith.constant 0 : index
    %520 = vector.load %arg7[%519, %c0_371, %c0_372] : memref<8x8x128xf32, #tpu.memory_space<vmem>>, vector<1x8x128xf32>
    %521 = vector.shape_cast %520 : vector<1x8x128xf32> to vector<8x128xf32>
    %522 = vector.shape_cast %518 : vector<8x128xf32> to vector<1x8x128xf32>
    tpu.vector_store %arg7[%519, %c0_371, %c0_372], %522 {strides = array<i32>} : memref<8x8x128xf32, #tpu.memory_space<vmem>>, vector<1x8x128xf32>,
    %c0_373 = arith.constant 0 : index
    %c0_374 = arith.constant 0 : index
    %523 = vector.load %arg14[%c0_373, %c0_374] : memref<8x128xf32, #tpu.memory_space<vmem>>, vector<8x128xf32>
    tpu.vector_store %arg14[%c0_373, %c0_374], %515 {strides = array<i32>} : memref<8x128xf32, #tpu.memory_space<vmem>>, vector<8x128xf32>,
    %c0_375 = arith.constant 0 : index
    %c0_376 = arith.constant 0 : index
    %524 = vector.load %arg15[%c0_375, %c0_376] : memref<8x128xf32, #tpu.memory_space<vmem>>, vector<8x128xf32>
    tpu.vector_store %arg15[%c0_375, %c0_376], %518 {strides = array<i32>} : memref<8x128xf32, #tpu.memory_space<vmem>>, vector<8x128xf32>,
    %c5_i32_377 = arith.constant 5 : i32
    %525 = arith.index_cast %c5_i32_377 : i32 to index
    %c0_378 = arith.constant 0 : index
    %c0_379 = arith.constant 0 : index
    %526 = vector.load %arg7[%525, %c0_378, %c0_379] : memref<8x8x128xf32, #tpu.memory_space<vmem>>, vector<1x8x128xf32>
    %527 = vector.shape_cast %526 : vector<1x8x128xf32> to vector<8x128xf32>
    %c0_380 = arith.constant 0 : index
    %c0_381 = arith.constant 0 : index
    %528 = vector.load %arg14[%c0_380, %c0_381] : memref<8x128xf32, #tpu.memory_space<vmem>>, vector<8x128xf32>
    %c0_382 = arith.constant 0 : index
    %c0_383 = arith.constant 0 : index
    %529 = vector.load %arg15[%c0_382, %c0_383] : memref<8x128xf32, #tpu.memory_space<vmem>>, vector<8x128xf32>
    %cst_384 = arith.constant 0.818730771 : f32
    %530 = vector.broadcast %cst_384 : f32 to vector<8x128xf32>
    %531 = arith.mulf %530, %528 : vector<8x128xf32>
    %532 = arith.addf %531, %527 : vector<8x128xf32>
    %cst_385 = arith.constant 0.904837429 : f32
    %533 = vector.broadcast %cst_385 : f32 to vector<8x128xf32>
    %534 = arith.mulf %533, %529 : vector<8x128xf32>
    %535 = arith.addf %534, %528 : vector<8x128xf32>
    %536 = arith.index_cast %c5_i32_377 : i32 to index
    %c0_386 = arith.constant 0 : index
    %c0_387 = arith.constant 0 : index
    %537 = vector.load %arg7[%536, %c0_386, %c0_387] : memref<8x8x128xf32, #tpu.memory_space<vmem>>, vector<1x8x128xf32>
    %538 = vector.shape_cast %537 : vector<1x8x128xf32> to vector<8x128xf32>
    %539 = vector.shape_cast %535 : vector<8x128xf32> to vector<1x8x128xf32>
    tpu.vector_store %arg7[%536, %c0_386, %c0_387], %539 {strides = array<i32>} : memref<8x8x128xf32, #tpu.memory_space<vmem>>, vector<1x8x128xf32>,
    %c0_388 = arith.constant 0 : index
    %c0_389 = arith.constant 0 : index
    %540 = vector.load %arg14[%c0_388, %c0_389] : memref<8x128xf32, #tpu.memory_space<vmem>>, vector<8x128xf32>
    tpu.vector_store %arg14[%c0_388, %c0_389], %532 {strides = array<i32>} : memref<8x128xf32, #tpu.memory_space<vmem>>, vector<8x128xf32>,
    %c0_390 = arith.constant 0 : index
    %c0_391 = arith.constant 0 : index
    %541 = vector.load %arg15[%c0_390, %c0_391] : memref<8x128xf32, #tpu.memory_space<vmem>>, vector<8x128xf32>
    tpu.vector_store %arg15[%c0_390, %c0_391], %535 {strides = array<i32>} : memref<8x128xf32, #tpu.memory_space<vmem>>, vector<8x128xf32>,
    %c6_i32_392 = arith.constant 6 : i32
    %542 = arith.index_cast %c6_i32_392 : i32 to index
    %c0_393 = arith.constant 0 : index
    %c0_394 = arith.constant 0 : index
    %543 = vector.load %arg7[%542, %c0_393, %c0_394] : memref<8x8x128xf32, #tpu.memory_space<vmem>>, vector<1x8x128xf32>
    %544 = vector.shape_cast %543 : vector<1x8x128xf32> to vector<8x128xf32>
    %c0_395 = arith.constant 0 : index
    %c0_396 = arith.constant 0 : index
    %545 = vector.load %arg14[%c0_395, %c0_396] : memref<8x128xf32, #tpu.memory_space<vmem>>, vector<8x128xf32>
    %c0_397 = arith.constant 0 : index
    %c0_398 = arith.constant 0 : index
    %546 = vector.load %arg15[%c0_397, %c0_398] : memref<8x128xf32, #tpu.memory_space<vmem>>, vector<8x128xf32>
    %cst_399 = arith.constant 0.818730771 : f32
    %547 = vector.broadcast %cst_399 : f32 to vector<8x128xf32>
    %548 = arith.mulf %547, %545 : vector<8x128xf32>
    %549 = arith.addf %548, %544 : vector<8x128xf32>
    %cst_400 = arith.constant 0.904837429 : f32
    %550 = vector.broadcast %cst_400 : f32 to vector<8x128xf32>
    %551 = arith.mulf %550, %546 : vector<8x128xf32>
    %552 = arith.addf %551, %545 : vector<8x128xf32>
    %553 = arith.index_cast %c6_i32_392 : i32 to index
    %c0_401 = arith.constant 0 : index
    %c0_402 = arith.constant 0 : index
    %554 = vector.load %arg7[%553, %c0_401, %c0_402] : memref<8x8x128xf32, #tpu.memory_space<vmem>>, vector<1x8x128xf32>
    %555 = vector.shape_cast %554 : vector<1x8x128xf32> to vector<8x128xf32>
    %556 = vector.shape_cast %552 : vector<8x128xf32> to vector<1x8x128xf32>
    tpu.vector_store %arg7[%553, %c0_401, %c0_402], %556 {strides = array<i32>} : memref<8x8x128xf32, #tpu.memory_space<vmem>>, vector<1x8x128xf32>,
    %c0_403 = arith.constant 0 : index
    %c0_404 = arith.constant 0 : index
    %557 = vector.load %arg14[%c0_403, %c0_404] : memref<8x128xf32, #tpu.memory_space<vmem>>, vector<8x128xf32>
    tpu.vector_store %arg14[%c0_403, %c0_404], %549 {strides = array<i32>} : memref<8x128xf32, #tpu.memory_space<vmem>>, vector<8x128xf32>,
    %c0_405 = arith.constant 0 : index
    %c0_406 = arith.constant 0 : index
    %558 = vector.load %arg15[%c0_405, %c0_406] : memref<8x128xf32, #tpu.memory_space<vmem>>, vector<8x128xf32>
    tpu.vector_store %arg15[%c0_405, %c0_406], %552 {strides = array<i32>} : memref<8x128xf32, #tpu.memory_space<vmem>>, vector<8x128xf32>,
    %c7_i32_407 = arith.constant 7 : i32
    %559 = arith.index_cast %c7_i32_407 : i32 to index
    %c0_408 = arith.constant 0 : index
    %c0_409 = arith.constant 0 : index
    %560 = vector.load %arg7[%559, %c0_408, %c0_409] : memref<8x8x128xf32, #tpu.memory_space<vmem>>, vector<1x8x128xf32>
    %561 = vector.shape_cast %560 : vector<1x8x128xf32> to vector<8x128xf32>
    %c0_410 = arith.constant 0 : index
    %c0_411 = arith.constant 0 : index
    %562 = vector.load %arg14[%c0_410, %c0_411] : memref<8x128xf32, #tpu.memory_space<vmem>>, vector<8x128xf32>
    %c0_412 = arith.constant 0 : index
    %c0_413 = arith.constant 0 : index
    %563 = vector.load %arg15[%c0_412, %c0_413] : memref<8x128xf32, #tpu.memory_space<vmem>>, vector<8x128xf32>
    %cst_414 = arith.constant 0.818730771 : f32
    %564 = vector.broadcast %cst_414 : f32 to vector<8x128xf32>
    %565 = arith.mulf %564, %562 : vector<8x128xf32>
    %566 = arith.addf %565, %561 : vector<8x128xf32>
    %cst_415 = arith.constant 0.904837429 : f32
    %567 = vector.broadcast %cst_415 : f32 to vector<8x128xf32>
    %568 = arith.mulf %567, %563 : vector<8x128xf32>
    %569 = arith.addf %568, %562 : vector<8x128xf32>
    %570 = arith.index_cast %c7_i32_407 : i32 to index
    %c0_416 = arith.constant 0 : index
    %c0_417 = arith.constant 0 : index
    %571 = vector.load %arg7[%570, %c0_416, %c0_417] : memref<8x8x128xf32, #tpu.memory_space<vmem>>, vector<1x8x128xf32>
    %572 = vector.shape_cast %571 : vector<1x8x128xf32> to vector<8x128xf32>
    %573 = vector.shape_cast %569 : vector<8x128xf32> to vector<1x8x128xf32>
    tpu.vector_store %arg7[%570, %c0_416, %c0_417], %573 {strides = array<i32>} : memref<8x8x128xf32, #tpu.memory_space<vmem>>, vector<1x8x128xf32>,
    %c0_418 = arith.constant 0 : index
    %c0_419 = arith.constant 0 : index
    %574 = vector.load %arg14[%c0_418, %c0_419] : memref<8x128xf32, #tpu.memory_space<vmem>>, vector<8x128xf32>
    tpu.vector_store %arg14[%c0_418, %c0_419], %566 {strides = array<i32>} : memref<8x128xf32, #tpu.memory_space<vmem>>, vector<8x128xf32>,
    %c0_420 = arith.constant 0 : index
    %c0_421 = arith.constant 0 : index
    %575 = vector.load %arg15[%c0_420, %c0_421] : memref<8x128xf32, #tpu.memory_space<vmem>>, vector<8x128xf32>
    tpu.vector_store %arg15[%c0_420, %c0_421], %569 {strides = array<i32>} : memref<8x128xf32, #tpu.memory_space<vmem>>, vector<8x128xf32>,
    %c8_i32_422 = arith.constant 8 : i32
    return
  }
  func.func @transform_0(%arg0: i32, %arg1: i32) -> (i32, i32, i32) {
    %c0_i32 = arith.constant 0 : i32
    %c0_i32_0 = arith.constant 0 : i32
    return %arg1, %arg0, %c0_i32 : i32, i32, i32
  }
  func.func @transform_1(%arg0: i32, %arg1: i32) -> (i32, i32) {
    %c0_i32 = arith.constant 0 : i32
    %c0_i32_0 = arith.constant 0 : i32
    %c0_i32_1 = arith.constant 0 : i32
    return %c0_i32, %c0_i32_0 : i32, i32
  }
  func.func @transform_2(%arg0: i32, %arg1: i32) -> (i32, i32) {
    %c0_i32 = arith.constant 0 : i32
    %c0_i32_0 = arith.constant 0 : i32
    %c0_i32_1 = arith.constant 0 : i32
    return %c0_i32, %c0_i32_0 : i32, i32
  }
  func.func @transform_3(%arg0: i32, %arg1: i32) -> (i32, i32) {
    %c0_i32 = arith.constant 0 : i32
    %c0_i32_0 = arith.constant 0 : i32
    %c0_i32_1 = arith.constant 0 : i32
    return %c0_i32, %c0_i32_0 : i32, i32
  }
  func.func @transform_4(%arg0: i32, %arg1: i32) -> (i32, i32) {
    %c0_i32 = arith.constant 0 : i32
    %c0_i32_0 = arith.constant 0 : i32
    %c0_i32_1 = arith.constant 0 : i32
    return %c0_i32, %c0_i32_0 : i32, i32
  }
  func.func @transform_5(%arg0: i32, %arg1: i32) -> (i32, i32, i32) {
    %c0_i32 = arith.constant 0 : i32
    %c0_i32_0 = arith.constant 0 : i32
    return %arg1, %arg0, %c0_i32 : i32, i32, i32
  }
}

</mosaic_0001>

<llo_original>
// kernel: _lambda_.1
$region0: #{_lambda_.1}
  #allocation0 [shape = 'u32[]', space=smem, size = 0x4, offset = 0x4, fixed_abs, tag = 'smem constant byte address 0x4 - core index']
  #allocation1 [shape = 'u32[144,128]{1,0:T(1,128)}', space=vmem, size = 0x12000, scoped, tag = 'internal scratch']
  #allocation2 [shape = 'f32[8,128]{1,0:T(8,128)}', space=vmem, size = 0x1000, scoped, tag = 'scratch operand']
  #allocation3 [shape = 'f32[8,128]{1,0:T(8,128)}', space=vmem, size = 0x1000, scoped, tag = 'scratch operand']
  #allocation4 [shape = 'bf16[8,8,128]{2,1,0:T(8,128)(2,1)}', space=vmem, size = 0x4000, scoped, tag = 'scratch operand']
  #allocation5 [shape = 'f32[8,128]{1,0:T(8,128)}', space=vmem, size = 0x1000, scoped, tag = 'scratch operand']
  #allocation6 [shape = 'f32[8,128]{1,0:T(8,128)}', space=vmem, size = 0x1000, scoped, tag = 'scratch operand']
  #allocation7 [shape = 'bf16[8,8,128]{2,1,0:T(8,128)(2,1)}', space=vmem, size = 0x4000, scoped, tag = 'scratch operand']
  #allocation8 [shape = 'f32[8,128]{1,0:T(8,128)}', space=vmem, size = 0x1000, scoped, tag = 'scratch operand']
  #allocation9 [shape = 'f32[8,128]{1,0:T(8,128)}', space=vmem, size = 0x1000, scoped, tag = 'scratch operand']
  %s0 = inlined_call_operand.vmem [shape: bf16[8,8,16], index: 0, kind: input, shape index: {}]
  %s1 = inlined_call_operand.vmem [shape: bf16[16,128], index: 1, kind: input, shape index: {}]
  %s2 = inlined_call_operand.vmem [shape: bf16[128,128], index: 2, kind: input, shape index: {}]
  %s3 = inlined_call_operand.vmem [shape: bf16[128,128], index: 3, kind: input, shape index: {}]
  %s4 = inlined_call_operand.vmem [shape: bf16[128,128], index: 4, kind: input, shape index: {}]
  %s5 = inlined_call_operand.vmem [shape: f32[8,8,128], index: 5, kind: output, shape index: {}]
  %s6 = sld [smem:[#allocation0]]
  $region34: #{_lambda_.1} parent=0
    _
  %s8 = ssub.s32 1, %s6
  %s9 = scalar_select 0, %s8, %s6
  // Predicated region
  $region2: #{_lambda_.1} parent=0 // pred_check
    _
  $region3: #{_lambda_.1} parent=0 // pred_check_branch
    %11 = sbr.rel (0) target = $region5
  $region4: #{_lambda_.1} parent=0 // pred_region
    _
  $region5: #{_lambda_.1} parent=0 // pred_fallthru
    _
  // Predicated region
  $region6: #{_lambda_.1} parent=0 // pred_check
    _
  $region7: #{_lambda_.1} parent=0 // pred_check_branch
    %13 = sbr.rel (0) target = $region9
  $region8: #{_lambda_.1} parent=0 // pred_region
    _
  $region9: #{_lambda_.1} parent=0 // pred_fallthru
    _
  // Predicated region
  $region10: #{_lambda_.1} parent=0 // pred_check
    _
  $region11: #{_lambda_.1} parent=0 // pred_check_branch
    %15 = sbr.rel (0) target = $region13
  $region12: #{_lambda_.1} parent=0 // pred_region
    _
  $region13: #{_lambda_.1} parent=0 // pred_fallthru
    _
  // Predicated region
  $region14: #{_lambda_.1} parent=0 // pred_check
    _
  $region15: #{_lambda_.1} parent=0 // pred_check_branch
    %17 = sbr.rel (0) target = $region17
  $region16: #{_lambda_.1} parent=0 // pred_region
    _
  $region17: #{_lambda_.1} parent=0 // pred_fallthru
    _
  // Predicated region
  $region18: #{_lambda_.1} parent=0 // pred_check
    _
  $region19: #{_lambda_.1} parent=0 // pred_check_branch
    %19 = sbr.rel (0) target = $region21
  $region20: #{_lambda_.1} parent=0 // pred_region
    _
  $region21: #{_lambda_.1} parent=0 // pred_fallthru
    _
  %p21 = scmp.eq.s32.totalorder 0, 0
  // Predicated region
  $region22: #{_lambda_.1} parent=0 // pred_check
    %p22 = pneg %p21
  $region23: #{_lambda_.1} parent=0 // pred_check_branch
    %24 = sbr.rel (%p22) target = $region25
  $region24: #{_lambda_.1} parent=0 // pred_region
    %25 = vst [vmem:[#allocation2] sm:$0xff] 0.0
    %26 = vst [vmem:[#allocation3] sm:$0xff] 0.0
    %27 = vst [vmem:[#allocation5] sm:$0xff] 0.0
    %28 = vst [vmem:[#allocation6] sm:$0xff] 0.0
    %29 = vst [vmem:[#allocation8] sm:$0xff] 0.0
    %30 = vst [vmem:[#allocation9] sm:$0xff] 0.0
  $region25: #{_lambda_.1} parent=0 // pred_fallthru
    _
  %v31 = vld [vmem:[%s0] sm:$0xf]
  %v32 = vld [vmem:[%s0 + $0x4] sm:$0xf]
  %v33 = vld [vmem:[%s0 + $0x8] sm:$0xf]
  %v34 = vld [vmem:[%s0 + $0xc] sm:$0xf]
  %v35 = vld [vmem:[%s0 + $0x10] sm:$0xf]
  %v36 = vld [vmem:[%s0 + $0x14] sm:$0xf]
  %v37 = vld [vmem:[%s0 + $0x18] sm:$0xf]
  %v38 = vld [vmem:[%s0 + $0x1c] sm:$0xf]
  %v39 = vld [vmem:[%s1] sm:$0xf]
  %v40 = vld [vmem:[%s1 + $0x4] sm:$0xf]
  %v49 = vunpack.c.l.b16 %v31
  %v50 = vunpack.c.l.b16 %v32
  %v51 = vunpack.c.l.b16 %v33
  %v52 = vunpack.c.l.b16 %v34
  %v53 = vunpack.c.l.b16 %v35
  %v54 = vunpack.c.l.b16 %v36
  %v55 = vunpack.c.l.b16 %v37
  %v56 = vunpack.c.l.b16 %v38
  %v57 = vpack.c.b16 %v50, %v49
  %v58 = vpack.c.b16 %v52, %v51
  %v59 = vpack.c.b16 %v54, %v53
  %v60 = vpack.c.b16 %v56, %v55
  %v63 = vunpack.c.l.b16 %v39
  %v64 = vunpack.c.l.b16 %v40
  %v65 = vpack.c.b16 %v64, %v63
  %vm67 = vcmask 130048
  %v69 = vsel %vm67, %v57, 0
  %v72 = vsel %vm67, %v58, 0
  %v75 = vsel %vm67, %v59, 0
  %v78 = vsel %vm67, %v60, 0
  %80 = vmatprep.subr.bf16.mxu0 0
  %81 = vmatpush1.bf16.msra.mxu0 0
  %82 = vmatprep.subr.bf16.mxu0 0
  %83 = vmatpush1.bf16.msra.mxu0 0
  %84 = vmatprep.subr.bf16.mxu0 0
  %85 = vmatpush1.bf16.msra.mxu0 0
  %86 = vmatprep.subr.bf16.mxu0 0
  %87 = vmatpush1.bf16.msra.mxu0 0
  %88 = vmatprep.subr.bf16.mxu0 0
  %89 = vmatpush1.bf16.msra.mxu0 0
  %90 = vmatprep.subr.bf16.mxu0 0
  %91 = vmatpush1.bf16.msra.mxu0 0
  %92 = vmatprep.subr.bf16.mxu0 0
  %93 = vmatpush1.bf16.msra.mxu0 0
  %94 = vmatprep.subr.bf16.mxu0 0
  %95 = vmatpush1.bf16.msra.mxu0 %v65
  %96 = vmatprep.subr.bf16.mxu0 0
  %97 = vmatpush2.bf16.msra.mxu0 0
  %98 = vmatprep.subr.bf16.mxu0 0
  %99 = vmatpush2.bf16.msra.mxu0 0
  %100 = vmatprep.subr.bf16.mxu0 0
  %101 = vmatpush2.bf16.msra.mxu0 0
  %102 = vmatprep.subr.bf16.mxu0 0
  %103 = vmatpush2.bf16.msra.mxu0 0
  %104 = vmatprep.subr.bf16.mxu0 0
  %105 = vmatpush2.bf16.msra.mxu0 0
  %106 = vmatprep.subr.bf16.mxu0 0
  %107 = vmatpush2.bf16.msra.mxu0 0
  %108 = vmatprep.subr.bf16.mxu0 0
  %109 = vmatpush2.bf16.msra.mxu0 0
  %110 = vmatprep.subr.bf16.mxu0 0
  %111 = vmatpush2.bf16.msra.mxu0 0
  %112 = vmatprep.mubr.bf16.mxu0 0
  %113 = vmatmul.mubr.bf16.gmra.mxu0 %v69
  %v114 = vpop.f32.mrf.mxu0
  %v115 = vadd.f32 0.0, %v114
  %v116 = vpop.f32.mrf.mxu0
  %v117 = vpop.f32.mrf.mxu0
  %v118 = vadd.f32 0.0, %v117
  %v119 = vpop.f32.mrf.mxu0
  %120 = vmatprep.mubr.bf16.mxu0 0
  %121 = vmatmul.mubr.bf16.gmra.mxu0 %v72
  %v122 = vpop.f32.mrf.mxu0
  %v123 = vadd.f32 0.0, %v122
  %v124 = vpop.f32.mrf.mxu0
  %v125 = vpop.f32.mrf.mxu0
  %v126 = vadd.f32 0.0, %v125
  %v127 = vpop.f32.mrf.mxu0
  %128 = vmatprep.mubr.bf16.mxu0 0
  %129 = vmatmul.mubr.bf16.gmra.mxu0 %v75
  %v130 = vpop.f32.mrf.mxu0
  %v131 = vadd.f32 0.0, %v130
  %v132 = vpop.f32.mrf.mxu0
  %v133 = vpop.f32.mrf.mxu0
  %v134 = vadd.f32 0.0, %v133
  %v135 = vpop.f32.mrf.mxu0
  %136 = vmatprep.mubr.bf16.mxu0 0
  %137 = vmatmul.mubr.bf16.gmra.mxu0 %v78
  %v138 = vpop.f32.mrf.mxu0
  %v139 = vadd.f32 0.0, %v138
  %v140 = vpop.f32.mrf.mxu0
  %v141 = vpop.f32.mrf.mxu0
  %v142 = vadd.f32 0.0, %v141
  %v143 = vpop.f32.mrf.mxu0
  %144 = vdwg.mxu0
  %v145 = vpack.c.bf16 %v115, %v115
  %v146 = vpack.c.bf16 %v118, %v118
  %v147 = vpack.c.bf16 %v123, %v123
  %v148 = vpack.c.bf16 %v126, %v126
  %v149 = vpack.c.bf16 %v131, %v131
  %v150 = vpack.c.bf16 %v134, %v134
  %v151 = vpack.c.bf16 %v139, %v139
  %v152 = vpack.c.bf16 %v142, %v142
  %153 = vst [vmem:[#allocation4] sm:$0xf] %v145
  %154 = vst [vmem:[#allocation4 + $0x4] sm:$0xf] %v146
  %155 = vst [vmem:[#allocation4 + $0x8] sm:$0xf] %v147
  %156 = vst [vmem:[#allocation4 + $0xc] sm:$0xf] %v148
  %157 = vst [vmem:[#allocation4 + $0x10] sm:$0xf] %v149
  %158 = vst [vmem:[#allocation4 + $0x14] sm:$0xf] %v150
  %159 = vst [vmem:[#allocation4 + $0x18] sm:$0xf] %v151
  %160 = vst [vmem:[#allocation4 + $0x1c] sm:$0xf] %v152
  %v161 = vld [vmem:[#allocation4] sm:$0xf]
  %v162 = vunpack.c.l.bf16 %v161
  %v163 = vld [vmem:[#allocation2] sm:$0xff]
  %v164 = vld [vmem:[#allocation3] sm:$0xff]
  %vm165 = vcmp.gt.f32.partialorder %v164, 1.0
  %v166 = vsel %vm165, 1, 0
  %v167 = vcvt.s32.f32 %v166
  %v168 = vpack.c.bf16 %v167, %v167
  %169 = vst [vmem:[#allocation4] sm:$0xf] %v168
  %v170 = vmul.f32 %v163, 0.8187308
  %v171 = vadd.f32 %v170, %v162
  %172 = vst [vmem:[#allocation2] sm:$0xff] %v171
  %v173 = vmul.f32 %v164, 0.9048374
  %v174 = vadd.f32 %v173, %v163
  %v175 = vsel %vm165, 0.0, %v174
  %176 = vst [vmem:[#allocation3] sm:$0xff] %v175
  %s177 = scalar_lea.vmem [#allocation4], 4
  %v178 = vld [vmem:[%s177] sm:$0xf]
  %v179 = vunpack.c.l.bf16 %v178
  %v180 = vld [vmem:[#allocation2] sm:$0xff]
  %v181 = vld [vmem:[#allocation3] sm:$0xff]
  %vm182 = vcmp.gt.f32.partialorder %v181, 1.0
  %v183 = vsel %vm182, 1, 0
  %v184 = vcvt.s32.f32 %v183
  %v185 = vpack.c.bf16 %v184, %v184
  %186 = vst [vmem:[%s177] sm:$0xf] %v185
  %v187 = vmul.f32 %v180, 0.8187308
  %v188 = vadd.f32 %v187, %v179
  %189 = vst [vmem:[#allocation2] sm:$0xff] %v188
  %v190 = vmul.f32 %v181, 0.9048374
  %v191 = vadd.f32 %v190, %v180
  %v192 = vsel %vm182, 0.0, %v191
  %193 = vst [vmem:[#allocation3] sm:$0xff] %v192
  %s194 = scalar_lea.vmem [#allocation4], 8
  %v195 = vld [vmem:[%s194] sm:$0xf]
  %v196 = vunpack.c.l.bf16 %v195
  %v197 = vld [vmem:[#allocation2] sm:$0xff]
  %v198 = vld [vmem:[#allocation3] sm:$0xff]
  %vm199 = vcmp.gt.f32.partialorder %v198, 1.0
  %v200 = vsel %vm199, 1, 0
  %v201 = vcvt.s32.f32 %v200
  %v202 = vpack.c.bf16 %v201, %v201
  %203 = vst [vmem:[%s194] sm:$0xf] %v202
  %v204 = vmul.f32 %v197, 0.8187308
  %v205 = vadd.f32 %v204, %v196
  %206 = vst [vmem:[#allocation2] sm:$0xff] %v205
  %v207 = vmul.f32 %v198, 0.9048374
  %v208 = vadd.f32 %v207, %v197
  %v209 = vsel %vm199, 0.0, %v208
  %210 = vst [vmem:[#allocation3] sm:$0xff] %v209
  %s211 = scalar_lea.vmem [#allocation4], 12
  %v212 = vld [vmem:[%s211] sm:$0xf]
  %v213 = vunpack.c.l.bf16 %v212
  %v214 = vld [vmem:[#allocation2] sm:$0xff]
  %v215 = vld [vmem:[#allocation3] sm:$0xff]
  %vm216 = vcmp.gt.f32.partialorder %v215, 1.0
  %v217 = vsel %vm216, 1, 0
  %v218 = vcvt.s32.f32 %v217
  %v219 = vpack.c.bf16 %v218, %v218
  %220 = vst [vmem:[%s211] sm:$0xf] %v219
  %v221 = vmul.f32 %v214, 0.8187308
  %v222 = vadd.f32 %v221, %v213
  %223 = vst [vmem:[#allocation2] sm:$0xff] %v222
  %v224 = vmul.f32 %v215, 0.9048374
  %v225 = vadd.f32 %v224, %v214
  %v226 = vsel %vm216, 0.0, %v225
  %227 = vst [vmem:[#allocation3] sm:$0xff] %v226
  %s228 = scalar_lea.vmem [#allocation4], 16
  %v229 = vld [vmem:[%s228] sm:$0xf]
  %v230 = vunpack.c.l.bf16 %v229
  %v231 = vld [vmem:[#allocation2] sm:$0xff]
  %v232 = vld [vmem:[#allocation3] sm:$0xff]
  %vm233 = vcmp.gt.f32.partialorder %v232, 1.0
  %v234 = vsel %vm233, 1, 0
  %v235 = vcvt.s32.f32 %v234
  %v236 = vpack.c.bf16 %v235, %v235
  %237 = vst [vmem:[%s228] sm:$0xf] %v236
  %v238 = vmul.f32 %v231, 0.8187308
  %v239 = vadd.f32 %v238, %v230
  %240 = vst [vmem:[#allocation2] sm:$0xff] %v239
  %v241 = vmul.f32 %v232, 0.9048374
  %v242 = vadd.f32 %v241, %v231
  %v243 = vsel %vm233, 0.0, %v242
  %244 = vst [vmem:[#allocation3] sm:$0xff] %v243
  %s245 = scalar_lea.vmem [#allocation4], 20
  %v246 = vld [vmem:[%s245] sm:$0xf]
  %v247 = vunpack.c.l.bf16 %v246
  %v248 = vld [vmem:[#allocation2] sm:$0xff]
  %v249 = vld [vmem:[#allocation3] sm:$0xff]
  %vm250 = vcmp.gt.f32.partialorder %v249, 1.0
  %v251 = vsel %vm250, 1, 0
  %v252 = vcvt.s32.f32 %v251
  %v253 = vpack.c.bf16 %v252, %v252
  %254 = vst [vmem:[%s245] sm:$0xf] %v253
  %v255 = vmul.f32 %v248, 0.8187308
  %v256 = vadd.f32 %v255, %v247
  %257 = vst [vmem:[#allocation2] sm:$0xff] %v256
  %v258 = vmul.f32 %v249, 0.9048374
  %v259 = vadd.f32 %v258, %v248
  %v260 = vsel %vm250, 0.0, %v259
  %261 = vst [vmem:[#allocation3] sm:$0xff] %v260
  %s262 = scalar_lea.vmem [#allocation4], 24
  %v263 = vld [vmem:[%s262] sm:$0xf]
  %v264 = vunpack.c.l.bf16 %v263
  %v265 = vld [vmem:[#allocation2] sm:$0xff]
  %v266 = vld [vmem:[#allocation3] sm:$0xff]
  %vm267 = vcmp.gt.f32.partialorder %v266, 1.0
  %v268 = vsel %vm267, 1, 0
  %v269 = vcvt.s32.f32 %v268
  %v270 = vpack.c.bf16 %v269, %v269
  %271 = vst [vmem:[%s262] sm:$0xf] %v270
  %v272 = vmul.f32 %v265, 0.8187308
  %v273 = vadd.f32 %v272, %v264
  %274 = vst [vmem:[#allocation2] sm:$0xff] %v273
  %v275 = vmul.f32 %v266, 0.9048374
  %v276 = vadd.f32 %v275, %v265
  %v277 = vsel %vm267, 0.0, %v276
  %278 = vst [vmem:[#allocation3] sm:$0xff] %v277
  %s279 = scalar_lea.vmem [#allocation4], 28
  %v280 = vld [vmem:[%s279] sm:$0xf]
  %v281 = vunpack.c.l.bf16 %v280
  %v282 = vld [vmem:[#allocation2] sm:$0xff]
  %v283 = vld [vmem:[#allocation3] sm:$0xff]
  %vm284 = vcmp.gt.f32.partialorder %v283, 1.0
  %v285 = vsel %vm284, 1, 0
  %v286 = vcvt.s32.f32 %v285
  %v287 = vpack.c.bf16 %v286, %v286
  %288 = vst [vmem:[%s279] sm:$0xf] %v287
  %v289 = vmul.f32 %v282, 0.8187308
  %v290 = vadd.f32 %v289, %v281
  %291 = vst [vmem:[#allocation2] sm:$0xff] %v290
  %v292 = vmul.f32 %v283, 0.9048374
  %v293 = vadd.f32 %v292, %v282
  %v294 = vsel %vm284, 0.0, %v293
  %295 = vst [vmem:[#allocation3] sm:$0xff] %v294
  %v296 = vld [vmem:[#allocation4] sm:$0xf]
  %v297 = vld [vmem:[#allocation4 + $0x4] sm:$0xf]
  %v298 = vld [vmem:[#allocation4 + $0x8] sm:$0xf]
  %v299 = vld [vmem:[#allocation4 + $0xc] sm:$0xf]
  %v300 = vld [vmem:[#allocation4 + $0x10] sm:$0xf]
  %v301 = vld [vmem:[#allocation4 + $0x14] sm:$0xf]
  %v302 = vld [vmem:[#allocation4 + $0x18] sm:$0xf]
  %v303 = vld [vmem:[#allocation4 + $0x1c] sm:$0xf]
  %v304 = vld [vmem:[%s2] sm:$0xf]
  %v305 = vld [vmem:[%s2 + $0x4] sm:$0xf]
  %v306 = vld [vmem:[%s2 + $0x8] sm:$0xf]
  %v307 = vld [vmem:[%s2 + $0xc] sm:$0xf]
  %v308 = vld [vmem:[%s2 + $0x10] sm:$0xf]
  %v309 = vld [vmem:[%s2 + $0x14] sm:$0xf]
  %v310 = vld [vmem:[%s2 + $0x18] sm:$0xf]
  %v311 = vld [vmem:[%s2 + $0x1c] sm:$0xf]
  %v312 = vld [vmem:[%s2 + $0x20] sm:$0xf]
  %v313 = vld [vmem:[%s2 + $0x24] sm:$0xf]
  %v314 = vld [vmem:[%s2 + $0x28] sm:$0xf]
  %v315 = vld [vmem:[%s2 + $0x2c] sm:$0xf]
  %v316 = vld [vmem:[%s2 + $0x30] sm:$0xf]
  %v317 = vld [vmem:[%s2 + $0x34] sm:$0xf]
  %v318 = vld [vmem:[%s2 + $0x38] sm:$0xf]
  %v319 = vld [vmem:[%s2 + $0x3c] sm:$0xf]
  %v328 = vunpack.c.l.b16 %v296
  %v329 = vunpack.c.l.b16 %v297
  %v330 = vunpack.c.l.b16 %v298
  %v331 = vunpack.c.l.b16 %v299
  %v332 = vunpack.c.l.b16 %v300
  %v333 = vunpack.c.l.b16 %v301
  %v334 = vunpack.c.l.b16 %v302
  %v335 = vunpack.c.l.b16 %v303
  %v336 = vpack.c.b16 %v329, %v328
  %v337 = vpack.c.b16 %v331, %v330
  %v338 = vpack.c.b16 %v333, %v332
  %v339 = vpack.c.b16 %v335, %v334
  %v360 = vunpack.c.l.b16 %v304
  %v361 = vunpack.c.l.b16 %v305
  %v362 = vunpack.c.l.b16 %v306
  %v363 = vunpack.c.l.b16 %v307
  %v364 = vunpack.c.l.b16 %v308
  %v365 = vunpack.c.l.b16 %v309
  %v366 = vunpack.c.l.b16 %v310
  %v367 = vunpack.c.l.b16 %v311
  %v368 = vunpack.c.l.b16 %v312
  %v369 = vunpack.c.l.b16 %v313
  %v370 = vunpack.c.l.b16 %v314
  %v371 = vunpack.c.l.b16 %v315
  %v372 = vunpack.c.l.b16 %v316
  %v373 = vunpack.c.l.b16 %v317
  %v374 = vunpack.c.l.b16 %v318
  %v375 = vunpack.c.l.b16 %v319
  %v376 = vpack.c.b16 %v361, %v360
  %v377 = vpack.c.b16 %v363, %v362
  %v378 = vpack.c.b16 %v365, %v364
  %v379 = vpack.c.b16 %v367, %v366
  %v380 = vpack.c.b16 %v369, %v368
  %v381 = vpack.c.b16 %v371, %v370
  %v382 = vpack.c.b16 %v373, %v372
  %v383 = vpack.c.b16 %v375, %v374
  %392 = vmatprep.subr.bf16.mxu0 0
  %393 = vmatpush1.bf16.msra.mxu0 %v383
  %394 = vmatprep.subr.bf16.mxu0 0
  %395 = vmatpush1.bf16.msra.mxu0 %v382
  %396 = vmatprep.subr.bf16.mxu0 0
  %397 = vmatpush1.bf16.msra.mxu0 %v381
  %398 = vmatprep.subr.bf16.mxu0 0
  %399 = vmatpush1.bf16.msra.mxu0 %v380
  %400 = vmatprep.subr.bf16.mxu0 0
  %401 = vmatpush1.bf16.msra.mxu0 %v379
  %402 = vmatprep.subr.bf16.mxu0 0
  %403 = vmatpush1.bf16.msra.mxu0 %v378
  %404 = vmatprep.subr.bf16.mxu0 0
  %405 = vmatpush1.bf16.msra.mxu0 %v377
  %406 = vmatprep.subr.bf16.mxu0 0
  %407 = vmatpush1.bf16.msra.mxu0 %v376
  %408 = vmatprep.subr.bf16.mxu0 0
  %409 = vmatpush2.bf16.msra.mxu0 0
  %410 = vmatprep.subr.bf16.mxu0 0
  %411 = vmatpush2.bf16.msra.mxu0 0
  %412 = vmatprep.subr.bf16.mxu0 0
  %413 = vmatpush2.bf16.msra.mxu0 0
  %414 = vmatprep.subr.bf16.mxu0 0
  %415 = vmatpush2.bf16.msra.mxu0 0
  %416 = vmatprep.subr.bf16.mxu0 0
  %417 = vmatpush2.bf16.msra.mxu0 0
  %418 = vmatprep.subr.bf16.mxu0 0
  %419 = vmatpush2.bf16.msra.mxu0 0
  %420 = vmatprep.subr.bf16.mxu0 0
  %421 = vmatpush2.bf16.msra.mxu0 0
  %422 = vmatprep.subr.bf16.mxu0 0
  %423 = vmatpush2.bf16.msra.mxu0 0
  %424 = vmatprep.mubr.bf16.mxu0 0
  %425 = vmatmul.mubr.bf16.gmra.mxu0 %v336
  %v426 = vpop.f32.mrf.mxu0
  %v427 = vadd.f32 0.0, %v426
  %v428 = vpop.f32.mrf.mxu0
  %v429 = vpop.f32.mrf.mxu0
  %v430 = vadd.f32 0.0, %v429
  %v431 = vpop.f32.mrf.mxu0
  %432 = vmatprep.mubr.bf16.mxu0 0
  %433 = vmatmul.mubr.bf16.gmra.mxu0 %v337
  %v434 = vpop.f32.mrf.mxu0
  %v435 = vadd.f32 0.0, %v434
  %v436 = vpop.f32.mrf.mxu0
  %v437 = vpop.f32.mrf.mxu0
  %v438 = vadd.f32 0.0, %v437
  %v439 = vpop.f32.mrf.mxu0
  %440 = vmatprep.mubr.bf16.mxu0 0
  %441 = vmatmul.mubr.bf16.gmra.mxu0 %v338
  %v442 = vpop.f32.mrf.mxu0
  %v443 = vadd.f32 0.0, %v442
  %v444 = vpop.f32.mrf.mxu0
  %v445 = vpop.f32.mrf.mxu0
  %v446 = vadd.f32 0.0, %v445
  %v447 = vpop.f32.mrf.mxu0
  %448 = vmatprep.mubr.bf16.mxu0 0
  %449 = vmatmul.mubr.bf16.gmra.mxu0 %v339
  %v450 = vpop.f32.mrf.mxu0
  %v451 = vadd.f32 0.0, %v450
  %v452 = vpop.f32.mrf.mxu0
  %v453 = vpop.f32.mrf.mxu0
  %v454 = vadd.f32 0.0, %v453
  %v455 = vpop.f32.mrf.mxu0
  %456 = vdwg.mxu0
  %v457 = vpack.c.bf16 %v427, %v427
  %v458 = vpack.c.bf16 %v430, %v430
  %v459 = vpack.c.bf16 %v435, %v435
  %v460 = vpack.c.bf16 %v438, %v438
  %v461 = vpack.c.bf16 %v443, %v443
  %v462 = vpack.c.bf16 %v446, %v446
  %v463 = vpack.c.bf16 %v451, %v451
  %v464 = vpack.c.bf16 %v454, %v454
  %465 = vst [vmem:[#allocation7] sm:$0xf] %v457
  %466 = vst [vmem:[#allocation7 + $0x4] sm:$0xf] %v458
  %467 = vst [vmem:[#allocation7 + $0x8] sm:$0xf] %v459
  %468 = vst [vmem:[#allocation7 + $0xc] sm:$0xf] %v460
  %469 = vst [vmem:[#allocation7 + $0x10] sm:$0xf] %v461
  %470 = vst [vmem:[#allocation7 + $0x14] sm:$0xf] %v462
  %471 = vst [vmem:[#allocation7 + $0x18] sm:$0xf] %v463
  %472 = vst [vmem:[#allocation7 + $0x1c] sm:$0xf] %v464
  %v473 = vld [vmem:[%s3] sm:$0xf]
  %v474 = vld [vmem:[%s3 + $0x4] sm:$0xf]
  %v475 = vld [vmem:[%s3 + $0x8] sm:$0xf]
  %v476 = vld [vmem:[%s3 + $0xc] sm:$0xf]
  %v477 = vld [vmem:[%s3 + $0x10] sm:$0xf]
  %v478 = vld [vmem:[%s3 + $0x14] sm:$0xf]
  %v479 = vld [vmem:[%s3 + $0x18] sm:$0xf]
  %v480 = vld [vmem:[%s3 + $0x1c] sm:$0xf]
  %v481 = vld [vmem:[%s3 + $0x20] sm:$0xf]
  %v482 = vld [vmem:[%s3 + $0x24] sm:$0xf]
  %v483 = vld [vmem:[%s3 + $0x28] sm:$0xf]
  %v484 = vld [vmem:[%s3 + $0x2c] sm:$0xf]
  %v485 = vld [vmem:[%s3 + $0x30] sm:$0xf]
  %v486 = vld [vmem:[%s3 + $0x34] sm:$0xf]
  %v487 = vld [vmem:[%s3 + $0x38] sm:$0xf]
  %v488 = vld [vmem:[%s3 + $0x3c] sm:$0xf]
  %v489 = vld [vmem:[#allocation7] sm:$0xf]
  %v490 = vunpack.c.l.bf16 %v489
  %v491 = vld [vmem:[#allocation5] sm:$0xff]
  %v492 = vld [vmem:[#allocation6] sm:$0xff]
  %vm493 = vcmp.gt.f32.partialorder %v492, 1.0
  %v494 = vsel %vm493, 1, 0
  %v495 = vcvt.s32.f32 %v494
  %v496 = vpack.c.bf16 %v495, %v495
  %497 = vst [vmem:[#allocation7] sm:$0xf] %v496
  %v514 = vunpack.c.l.b16 %v473
  %v515 = vunpack.c.l.b16 %v474
  %v516 = vunpack.c.l.b16 %v475
  %v517 = vunpack.c.l.b16 %v476
  %v518 = vunpack.c.l.b16 %v477
  %v519 = vunpack.c.l.b16 %v478
  %v520 = vunpack.c.l.b16 %v479
  %v521 = vunpack.c.l.b16 %v480
  %v522 = vunpack.c.l.b16 %v481
  %v523 = vunpack.c.l.b16 %v482
  %v524 = vunpack.c.l.b16 %v483
  %v525 = vunpack.c.l.b16 %v484
  %v526 = vunpack.c.l.b16 %v485
  %v527 = vunpack.c.l.b16 %v486
  %v528 = vunpack.c.l.b16 %v487
  %v529 = vunpack.c.l.b16 %v488
  %v530 = vpack.c.b16 %v515, %v514
  %v531 = vpack.c.b16 %v517, %v516
  %v532 = vpack.c.b16 %v519, %v518
  %v533 = vpack.c.b16 %v521, %v520
  %v534 = vpack.c.b16 %v523, %v522
  %v535 = vpack.c.b16 %v525, %v524
  %v536 = vpack.c.b16 %v527, %v526
  %v537 = vpack.c.b16 %v529, %v528
  %546 = vmatprep.subr.bf16.mxu0 0
  %547 = vmatpush1.bf16.msra.mxu0 %v537
  %548 = vmatprep.subr.bf16.mxu0 0
  %549 = vmatpush1.bf16.msra.mxu0 %v536
  %550 = vmatprep.subr.bf16.mxu0 0
  %551 = vmatpush1.bf16.msra.mxu0 %v535
  %552 = vmatprep.subr.bf16.mxu0 0
  %553 = vmatpush1.bf16.msra.mxu0 %v534
  %554 = vmatprep.subr.bf16.mxu0 0
  %555 = vmatpush1.bf16.msra.mxu0 %v533
  %556 = vmatprep.subr.bf16.mxu0 0
  %557 = vmatpush1.bf16.msra.mxu0 %v532
  %558 = vmatprep.subr.bf16.mxu0 0
  %559 = vmatpush1.bf16.msra.mxu0 %v531
  %560 = vmatprep.subr.bf16.mxu0 0
  %561 = vmatpush1.bf16.msra.mxu0 %v530
  %562 = vmatprep.subr.bf16.mxu0 0
  %563 = vmatpush2.bf16.msra.mxu0 0
  %564 = vmatprep.subr.bf16.mxu0 0
  %565 = vmatpush2.bf16.msra.mxu0 0
  %566 = vmatprep.subr.bf16.mxu0 0
  %567 = vmatpush2.bf16.msra.mxu0 0
  %568 = vmatprep.subr.bf16.mxu0 0
  %569 = vmatpush2.bf16.msra.mxu0 0
  %570 = vmatprep.subr.bf16.mxu0 0
  %571 = vmatpush2.bf16.msra.mxu0 0
  %572 = vmatprep.subr.bf16.mxu0 0
  %573 = vmatpush2.bf16.msra.mxu0 0
  %574 = vmatprep.subr.bf16.mxu0 0
  %575 = vmatpush2.bf16.msra.mxu0 0
  %576 = vmatprep.subr.bf16.mxu0 0
  %577 = vmatpush2.bf16.msra.mxu0 0
  %578 = vmatprep.mubr.bf16.mxu0 0
  %579 = vmatmul.mubr.bf16.gmra.mxu0 %v496
  %v580 = vpop.f32.mrf.mxu0
  %v581 = vadd.f32 0.0, %v580
  %v582 = vpop.f32.mrf.mxu0
  %v583 = vpop.f32.mrf.mxu0
  %v584 = vpop.f32.mrf.mxu0
  %585 = vdwg.mxu0
  %v586 = vmul.f32 %v491, 0.8187308
  %v587 = vadd.f32 %v586, %v490
  %v588 = vadd.f32 %v587, %v581
  %589 = vst [vmem:[#allocation5] sm:$0xff] %v588
  %v590 = vmul.f32 %v492, 0.9048374
  %v591 = vadd.f32 %v590, %v491
  %v592 = vsel %vm493, 0.0, %v591
  %593 = vst [vmem:[#allocation6] sm:$0xff] %v592
  %s594 = scalar_lea.vmem [#allocation7], 4
  %v595 = vld [vmem:[%s594] sm:$0xf]
  %v596 = vunpack.c.l.bf16 %v595
  %v597 = vld [vmem:[#allocation5] sm:$0xff]
  %v598 = vld [vmem:[#allocation6] sm:$0xff]
  %vm599 = vcmp.gt.f32.partialorder %v598, 1.0
  %v600 = vsel %vm599, 1, 0
  %v601 = vcvt.s32.f32 %v600
  %v602 = vpack.c.bf16 %v601, %v601
  %603 = vst [vmem:[%s594] sm:$0xf] %v602
  %604 = vmatprep.subr.bf16.mxu0 0
  %605 = vmatpush1.bf16.msra.mxu0 %v537
  %606 = vmatprep.subr.bf16.mxu0 0
  %607 = vmatpush1.bf16.msra.mxu0 %v536
  %608 = vmatprep.subr.bf16.mxu0 0
  %609 = vmatpush1.bf16.msra.mxu0 %v535
  %610 = vmatprep.subr.bf16.mxu0 0
  %611 = vmatpush1.bf16.msra.mxu0 %v534
  %612 = vmatprep.subr.bf16.mxu0 0
  %613 = vmatpush1.bf16.msra.mxu0 %v533
  %614 = vmatprep.subr.bf16.mxu0 0
  %615 = vmatpush1.bf16.msra.mxu0 %v532
  %616 = vmatprep.subr.bf16.mxu0 0
  %617 = vmatpush1.bf16.msra.mxu0 %v531
  %618 = vmatprep.subr.bf16.mxu0 0
  %619 = vmatpush1.bf16.msra.mxu0 %v530
  %620 = vmatprep.subr.bf16.mxu0 0
  %621 = vmatpush2.bf16.msra.mxu0 0
  %622 = vmatprep.subr.bf16.mxu0 0
  %623 = vmatpush2.bf16.msra.mxu0 0
  %624 = vmatprep.subr.bf16.mxu0 0
  %625 = vmatpush2.bf16.msra.mxu0 0
  %626 = vmatprep.subr.bf16.mxu0 0
  %627 = vmatpush2.bf16.msra.mxu0 0
  %628 = vmatprep.subr.bf16.mxu0 0
  %629 = vmatpush2.bf16.msra.mxu0 0
  %630 = vmatprep.subr.bf16.mxu0 0
  %631 = vmatpush2.bf16.msra.mxu0 0
  %632 = vmatprep.subr.bf16.mxu0 0
  %633 = vmatpush2.bf16.msra.mxu0 0
  %634 = vmatprep.subr.bf16.mxu0 0
  %635 = vmatpush2.bf16.msra.mxu0 0
  %636 = vmatprep.mubr.bf16.mxu0 0
  %637 = vmatmul.mubr.bf16.gmra.mxu0 %v602
  %v638 = vpop.f32.mrf.mxu0
  %v639 = vadd.f32 0.0, %v638
  %v640 = vpop.f32.mrf.mxu0
  %v641 = vpop.f32.mrf.mxu0
  %v642 = vpop.f32.mrf.mxu0
  %643 = vdwg.mxu0
  %v644 = vmul.f32 %v597, 0.8187308
  %v645 = vadd.f32 %v644, %v596
  %v646 = vadd.f32 %v645, %v639
  %647 = vst [vmem:[#allocation5] sm:$0xff] %v646
  %v648 = vmul.f32 %v598, 0.9048374
  %v649 = vadd.f32 %v648, %v597
  %v650 = vsel %vm599, 0.0, %v649
  %651 = vst [vmem:[#allocation6] sm:$0xff] %v650
  %s652 = scalar_lea.vmem [#allocation7], 8
  %v653 = vld [vmem:[%s652] sm:$0xf]
  %v654 = vunpack.c.l.bf16 %v653
  %v655 = vld [vmem:[#allocation5] sm:$0xff]
  %v656 = vld [vmem:[#allocation6] sm:$0xff]
  %vm657 = vcmp.gt.f32.partialorder %v656, 1.0
  %v658 = vsel %vm657, 1, 0
  %v659 = vcvt.s32.f32 %v658
  %v660 = vpack.c.bf16 %v659, %v659
  %661 = vst [vmem:[%s652] sm:$0xf] %v660
  %662 = vmatprep.subr.bf16.mxu0 0
  %663 = vmatpush1.bf16.msra.mxu0 %v537
  %664 = vmatprep.subr.bf16.mxu0 0
  %665 = vmatpush1.bf16.msra.mxu0 %v536
  %666 = vmatprep.subr.bf16.mxu0 0
  %667 = vmatpush1.bf16.msra.mxu0 %v535
  %668 = vmatprep.subr.bf16.mxu0 0
  %669 = vmatpush1.bf16.msra.mxu0 %v534
  %670 = vmatprep.subr.bf16.mxu0 0
  %671 = vmatpush1.bf16.msra.mxu0 %v533
  %672 = vmatprep.subr.bf16.mxu0 0
  %673 = vmatpush1.bf16.msra.mxu0 %v532
  %674 = vmatprep.subr.bf16.mxu0 0
  %675 = vmatpush1.bf16.msra.mxu0 %v531
  %676 = vmatprep.subr.bf16.mxu0 0
  %677 = vmatpush1.bf16.msra.mxu0 %v530
  %678 = vmatprep.subr.bf16.mxu0 0
  %679 = vmatpush2.bf16.msra.mxu0 0
  %680 = vmatprep.subr.bf16.mxu0 0
  %681 = vmatpush2.bf16.msra.mxu0 0
  %682 = vmatprep.subr.bf16.mxu0 0
  %683 = vmatpush2.bf16.msra.mxu0 0
  %684 = vmatprep.subr.bf16.mxu0 0
  %685 = vmatpush2.bf16.msra.mxu0 0
  %686 = vmatprep.subr.bf16.mxu0 0
  %687 = vmatpush2.bf16.msra.mxu0 0
  %688 = vmatprep.subr.bf16.mxu0 0
  %689 = vmatpush2.bf16.msra.mxu0 0
  %690 = vmatprep.subr.bf16.mxu0 0
  %691 = vmatpush2.bf16.msra.mxu0 0
  %692 = vmatprep.subr.bf16.mxu0 0
  %693 = vmatpush2.bf16.msra.mxu0 0
  %694 = vmatprep.mubr.bf16.mxu0 0
  %695 = vmatmul.mubr.bf16.gmra.mxu0 %v660
  %v696 = vpop.f32.mrf.mxu0
  %v697 = vadd.f32 0.0, %v696
  %v698 = vpop.f32.mrf.mxu0
  %v699 = vpop.f32.mrf.mxu0
  %v700 = vpop.f32.mrf.mxu0
  %701 = vdwg.mxu0
  %v702 = vmul.f32 %v655, 0.8187308
  %v703 = vadd.f32 %v702, %v654
  %v704 = vadd.f32 %v703, %v697
  %705 = vst [vmem:[#allocation5] sm:$0xff] %v704
  %v706 = vmul.f32 %v656, 0.9048374
  %v707 = vadd.f32 %v706, %v655
  %v708 = vsel %vm657, 0.0, %v707
  %709 = vst [vmem:[#allocation6] sm:$0xff] %v708
  %s710 = scalar_lea.vmem [#allocation7], 12
  %v711 = vld [vmem:[%s710] sm:$0xf]
  %v712 = vunpack.c.l.bf16 %v711
  %v713 = vld [vmem:[#allocation5] sm:$0xff]
  %v714 = vld [vmem:[#allocation6] sm:$0xff]
  %vm715 = vcmp.gt.f32.partialorder %v714, 1.0
  %v716 = vsel %vm715, 1, 0
  %v717 = vcvt.s32.f32 %v716
  %v718 = vpack.c.bf16 %v717, %v717
  %719 = vst [vmem:[%s710] sm:$0xf] %v718
  %720 = vmatprep.subr.bf16.mxu0 0
  %721 = vmatpush1.bf16.msra.mxu0 %v537
  %722 = vmatprep.subr.bf16.mxu0 0
  %723 = vmatpush1.bf16.msra.mxu0 %v536
  %724 = vmatprep.subr.bf16.mxu0 0
  %725 = vmatpush1.bf16.msra.mxu0 %v535
  %726 = vmatprep.subr.bf16.mxu0 0
  %727 = vmatpush1.bf16.msra.mxu0 %v534
  %728 = vmatprep.subr.bf16.mxu0 0
  %729 = vmatpush1.bf16.msra.mxu0 %v533
  %730 = vmatprep.subr.bf16.mxu0 0
  %731 = vmatpush1.bf16.msra.mxu0 %v532
  %732 = vmatprep.subr.bf16.mxu0 0
  %733 = vmatpush1.bf16.msra.mxu0 %v531
  %734 = vmatprep.subr.bf16.mxu0 0
  %735 = vmatpush1.bf16.msra.mxu0 %v530
  %736 = vmatprep.subr.bf16.mxu0 0
  %737 = vmatpush2.bf16.msra.mxu0 0
  %738 = vmatprep.subr.bf16.mxu0 0
  %739 = vmatpush2.bf16.msra.mxu0 0
  %740 = vmatprep.subr.bf16.mxu0 0
  %741 = vmatpush2.bf16.msra.mxu0 0
  %742 = vmatprep.subr.bf16.mxu0 0
  %743 = vmatpush2.bf16.msra.mxu0 0
  %744 = vmatprep.subr.bf16.mxu0 0
  %745 = vmatpush2.bf16.msra.mxu0 0
  %746 = vmatprep.subr.bf16.mxu0 0
  %747 = vmatpush2.bf16.msra.mxu0 0
  %748 = vmatprep.subr.bf16.mxu0 0
  %749 = vmatpush2.bf16.msra.mxu0 0
  %750 = vmatprep.subr.bf16.mxu0 0
  %751 = vmatpush2.bf16.msra.mxu0 0
  %752 = vmatprep.mubr.bf16.mxu0 0
  %753 = vmatmul.mubr.bf16.gmra.mxu0 %v718
  %v754 = vpop.f32.mrf.mxu0
  %v755 = vadd.f32 0.0, %v754
  %v756 = vpop.f32.mrf.mxu0
  %v757 = vpop.f32.mrf.mxu0
  %v758 = vpop.f32.mrf.mxu0
  %759 = vdwg.mxu0
  %v760 = vmul.f32 %v713, 0.8187308
  %v761 = vadd.f32 %v760, %v712
  %v762 = vadd.f32 %v761, %v755
  %763 = vst [vmem:[#allocation5] sm:$0xff] %v762
  %v764 = vmul.f32 %v714, 0.9048374
  %v765 = vadd.f32 %v764, %v713
  %v766 = vsel %vm715, 0.0, %v765
  %767 = vst [vmem:[#allocation6] sm:$0xff] %v766
  %s768 = scalar_lea.vmem [#allocation7], 16
  %v769 = vld [vmem:[%s768] sm:$0xf]
  %v770 = vunpack.c.l.bf16 %v769
  %v771 = vld [vmem:[#allocation5] sm:$0xff]
  %v772 = vld [vmem:[#allocation6] sm:$0xff]
  %vm773 = vcmp.gt.f32.partialorder %v772, 1.0
  %v774 = vsel %vm773, 1, 0
  %v775 = vcvt.s32.f32 %v774
  %v776 = vpack.c.bf16 %v775, %v775
  %777 = vst [vmem:[%s768] sm:$0xf] %v776
  %778 = vmatprep.subr.bf16.mxu0 0
  %779 = vmatpush1.bf16.msra.mxu0 %v537
  %780 = vmatprep.subr.bf16.mxu0 0
  %781 = vmatpush1.bf16.msra.mxu0 %v536
  %782 = vmatprep.subr.bf16.mxu0 0
  %783 = vmatpush1.bf16.msra.mxu0 %v535
  %784 = vmatprep.subr.bf16.mxu0 0
  %785 = vmatpush1.bf16.msra.mxu0 %v534
  %786 = vmatprep.subr.bf16.mxu0 0
  %787 = vmatpush1.bf16.msra.mxu0 %v533
  %788 = vmatprep.subr.bf16.mxu0 0
  %789 = vmatpush1.bf16.msra.mxu0 %v532
  %790 = vmatprep.subr.bf16.mxu0 0
  %791 = vmatpush1.bf16.msra.mxu0 %v531
  %792 = vmatprep.subr.bf16.mxu0 0
  %793 = vmatpush1.bf16.msra.mxu0 %v530
  %794 = vmatprep.subr.bf16.mxu0 0
  %795 = vmatpush2.bf16.msra.mxu0 0
  %796 = vmatprep.subr.bf16.mxu0 0
  %797 = vmatpush2.bf16.msra.mxu0 0
  %798 = vmatprep.subr.bf16.mxu0 0
  %799 = vmatpush2.bf16.msra.mxu0 0
  %800 = vmatprep.subr.bf16.mxu0 0
  %801 = vmatpush2.bf16.msra.mxu0 0
  %802 = vmatprep.subr.bf16.mxu0 0
  %803 = vmatpush2.bf16.msra.mxu0 0
  %804 = vmatprep.subr.bf16.mxu0 0
  %805 = vmatpush2.bf16.msra.mxu0 0
  %806 = vmatprep.subr.bf16.mxu0 0
  %807 = vmatpush2.bf16.msra.mxu0 0
  %808 = vmatprep.subr.bf16.mxu0 0
  %809 = vmatpush2.bf16.msra.mxu0 0
  %810 = vmatprep.mubr.bf16.mxu0 0
  %811 = vmatmul.mubr.bf16.gmra.mxu0 %v776
  %v812 = vpop.f32.mrf.mxu0
  %v813 = vadd.f32 0.0, %v812
  %v814 = vpop.f32.mrf.mxu0
  %v815 = vpop.f32.mrf.mxu0
  %v816 = vpop.f32.mrf.mxu0
  %817 = vdwg.mxu0
  %v818 = vmul.f32 %v771, 0.8187308
  %v819 = vadd.f32 %v818, %v770
  %v820 = vadd.f32 %v819, %v813
  %821 = vst [vmem:[#allocation5] sm:$0xff] %v820
  %v822 = vmul.f32 %v772, 0.9048374
  %v823 = vadd.f32 %v822, %v771
  %v824 = vsel %vm773, 0.0, %v823
  %825 = vst [vmem:[#allocation6] sm:$0xff] %v824
  %s826 = scalar_lea.vmem [#allocation7], 20
  %v827 = vld [vmem:[%s826] sm:$0xf]
  %v828 = vunpack.c.l.bf16 %v827
  %v829 = vld [vmem:[#allocation5] sm:$0xff]
  %v830 = vld [vmem:[#allocation6] sm:$0xff]
  %vm831 = vcmp.gt.f32.partialorder %v830, 1.0
  %v832 = vsel %vm831, 1, 0
  %v833 = vcvt.s32.f32 %v832
  %v834 = vpack.c.bf16 %v833, %v833
  %835 = vst [vmem:[%s826] sm:$0xf] %v834
  %836 = vmatprep.subr.bf16.mxu0 0
  %837 = vmatpush1.bf16.msra.mxu0 %v537
  %838 = vmatprep.subr.bf16.mxu0 0
  %839 = vmatpush1.bf16.msra.mxu0 %v536
  %840 = vmatprep.subr.bf16.mxu0 0
  %841 = vmatpush1.bf16.msra.mxu0 %v535
  %842 = vmatprep.subr.bf16.mxu0 0
  %843 = vmatpush1.bf16.msra.mxu0 %v534
  %844 = vmatprep.subr.bf16.mxu0 0
  %845 = vmatpush1.bf16.msra.mxu0 %v533
  %846 = vmatprep.subr.bf16.mxu0 0
  %847 = vmatpush1.bf16.msra.mxu0 %v532
  %848 = vmatprep.subr.bf16.mxu0 0
  %849 = vmatpush1.bf16.msra.mxu0 %v531
  %850 = vmatprep.subr.bf16.mxu0 0
  %851 = vmatpush1.bf16.msra.mxu0 %v530
  %852 = vmatprep.subr.bf16.mxu0 0
  %853 = vmatpush2.bf16.msra.mxu0 0
  %854 = vmatprep.subr.bf16.mxu0 0
  %855 = vmatpush2.bf16.msra.mxu0 0
  %856 = vmatprep.subr.bf16.mxu0 0
  %857 = vmatpush2.bf16.msra.mxu0 0
  %858 = vmatprep.subr.bf16.mxu0 0
  %859 = vmatpush2.bf16.msra.mxu0 0
  %860 = vmatprep.subr.bf16.mxu0 0
  %861 = vmatpush2.bf16.msra.mxu0 0
  %862 = vmatprep.subr.bf16.mxu0 0
  %863 = vmatpush2.bf16.msra.mxu0 0
  %864 = vmatprep.subr.bf16.mxu0 0
  %865 = vmatpush2.bf16.msra.mxu0 0
  %866 = vmatprep.subr.bf16.mxu0 0
  %867 = vmatpush2.bf16.msra.mxu0 0
  %868 = vmatprep.mubr.bf16.mxu0 0
  %869 = vmatmul.mubr.bf16.gmra.mxu0 %v834
  %v870 = vpop.f32.mrf.mxu0
  %v871 = vadd.f32 0.0, %v870
  %v872 = vpop.f32.mrf.mxu0
  %v873 = vpop.f32.mrf.mxu0
  %v874 = vpop.f32.mrf.mxu0
  %875 = vdwg.mxu0
  %v876 = vmul.f32 %v829, 0.8187308
  %v877 = vadd.f32 %v876, %v828
  %v878 = vadd.f32 %v877, %v871
  %879 = vst [vmem:[#allocation5] sm:$0xff] %v878
  %v880 = vmul.f32 %v830, 0.9048374
  %v881 = vadd.f32 %v880, %v829
  %v882 = vsel %vm831, 0.0, %v881
  %883 = vst [vmem:[#allocation6] sm:$0xff] %v882
  %s884 = scalar_lea.vmem [#allocation7], 24
  %v885 = vld [vmem:[%s884] sm:$0xf]
  %v886 = vunpack.c.l.bf16 %v885
  %v887 = vld [vmem:[#allocation5] sm:$0xff]
  %v888 = vld [vmem:[#allocation6] sm:$0xff]
  %vm889 = vcmp.gt.f32.partialorder %v888, 1.0
  %v890 = vsel %vm889, 1, 0
  %v891 = vcvt.s32.f32 %v890
  %v892 = vpack.c.bf16 %v891, %v891
  %893 = vst [vmem:[%s884] sm:$0xf] %v892
  %894 = vmatprep.subr.bf16.mxu0 0
  %895 = vmatpush1.bf16.msra.mxu0 %v537
  %896 = vmatprep.subr.bf16.mxu0 0
  %897 = vmatpush1.bf16.msra.mxu0 %v536
  %898 = vmatprep.subr.bf16.mxu0 0
  %899 = vmatpush1.bf16.msra.mxu0 %v535
  %900 = vmatprep.subr.bf16.mxu0 0
  %901 = vmatpush1.bf16.msra.mxu0 %v534
  %902 = vmatprep.subr.bf16.mxu0 0
  %903 = vmatpush1.bf16.msra.mxu0 %v533
  %904 = vmatprep.subr.bf16.mxu0 0
  %905 = vmatpush1.bf16.msra.mxu0 %v532
  %906 = vmatprep.subr.bf16.mxu0 0
  %907 = vmatpush1.bf16.msra.mxu0 %v531
  %908 = vmatprep.subr.bf16.mxu0 0
  %909 = vmatpush1.bf16.msra.mxu0 %v530
  %910 = vmatprep.subr.bf16.mxu0 0
  %911 = vmatpush2.bf16.msra.mxu0 0
  %912 = vmatprep.subr.bf16.mxu0 0
  %913 = vmatpush2.bf16.msra.mxu0 0
  %914 = vmatprep.subr.bf16.mxu0 0
  %915 = vmatpush2.bf16.msra.mxu0 0
  %916 = vmatprep.subr.bf16.mxu0 0
  %917 = vmatpush2.bf16.msra.mxu0 0
  %918 = vmatprep.subr.bf16.mxu0 0
  %919 = vmatpush2.bf16.msra.mxu0 0
  %920 = vmatprep.subr.bf16.mxu0 0
  %921 = vmatpush2.bf16.msra.mxu0 0
  %922 = vmatprep.subr.bf16.mxu0 0
  %923 = vmatpush2.bf16.msra.mxu0 0
  %924 = vmatprep.subr.bf16.mxu0 0
  %925 = vmatpush2.bf16.msra.mxu0 0
  %926 = vmatprep.mubr.bf16.mxu0 0
  %927 = vmatmul.mubr.bf16.gmra.mxu0 %v892
  %v928 = vpop.f32.mrf.mxu0
  %v929 = vadd.f32 0.0, %v928
  %v930 = vpop.f32.mrf.mxu0
  %v931 = vpop.f32.mrf.mxu0
  %v932 = vpop.f32.mrf.mxu0
  %933 = vdwg.mxu0
  %v934 = vmul.f32 %v887, 0.8187308
  %v935 = vadd.f32 %v934, %v886
  %v936 = vadd.f32 %v935, %v929
  %937 = vst [vmem:[#allocation5] sm:$0xff] %v936
  %v938 = vmul.f32 %v888, 0.9048374
  %v939 = vadd.f32 %v938, %v887
  %v940 = vsel %vm889, 0.0, %v939
  %941 = vst [vmem:[#allocation6] sm:$0xff] %v940
  %s942 = scalar_lea.vmem [#allocation7], 28
  %v943 = vld [vmem:[%s942] sm:$0xf]
  %v944 = vunpack.c.l.bf16 %v943
  %v945 = vld [vmem:[#allocation5] sm:$0xff]
  %v946 = vld [vmem:[#allocation6] sm:$0xff]
  %vm947 = vcmp.gt.f32.partialorder %v946, 1.0
  %v948 = vsel %vm947, 1, 0
  %v949 = vcvt.s32.f32 %v948
  %v950 = vpack.c.bf16 %v949, %v949
  %951 = vst [vmem:[%s942] sm:$0xf] %v950
  %952 = vmatprep.subr.bf16.mxu0 0
  %953 = vmatpush1.bf16.msra.mxu0 %v537
  %954 = vmatprep.subr.bf16.mxu0 0
  %955 = vmatpush1.bf16.msra.mxu0 %v536
  %956 = vmatprep.subr.bf16.mxu0 0
  %957 = vmatpush1.bf16.msra.mxu0 %v535
  %958 = vmatprep.subr.bf16.mxu0 0
  %959 = vmatpush1.bf16.msra.mxu0 %v534
  %960 = vmatprep.subr.bf16.mxu0 0
  %961 = vmatpush1.bf16.msra.mxu0 %v533
  %962 = vmatprep.subr.bf16.mxu0 0
  %963 = vmatpush1.bf16.msra.mxu0 %v532
  %964 = vmatprep.subr.bf16.mxu0 0
  %965 = vmatpush1.bf16.msra.mxu0 %v531
  %966 = vmatprep.subr.bf16.mxu0 0
  %967 = vmatpush1.bf16.msra.mxu0 %v530
  %968 = vmatprep.subr.bf16.mxu0 0
  %969 = vmatpush2.bf16.msra.mxu0 0
  %970 = vmatprep.subr.bf16.mxu0 0
  %971 = vmatpush2.bf16.msra.mxu0 0
  %972 = vmatprep.subr.bf16.mxu0 0
  %973 = vmatpush2.bf16.msra.mxu0 0
  %974 = vmatprep.subr.bf16.mxu0 0
  %975 = vmatpush2.bf16.msra.mxu0 0
  %976 = vmatprep.subr.bf16.mxu0 0
  %977 = vmatpush2.bf16.msra.mxu0 0
  %978 = vmatprep.subr.bf16.mxu0 0
  %979 = vmatpush2.bf16.msra.mxu0 0
  %980 = vmatprep.subr.bf16.mxu0 0
  %981 = vmatpush2.bf16.msra.mxu0 0
  %982 = vmatprep.subr.bf16.mxu0 0
  %983 = vmatpush2.bf16.msra.mxu0 0
  %984 = vmatprep.mubr.bf16.mxu0 0
  %985 = vmatmul.mubr.bf16.gmra.mxu0 %v950
  %v986 = vpop.f32.mrf.mxu0
  %v987 = vadd.f32 0.0, %v986
  %v988 = vpop.f32.mrf.mxu0
  %v989 = vpop.f32.mrf.mxu0
  %v990 = vpop.f32.mrf.mxu0
  %991 = vdwg.mxu0
  %v992 = vmul.f32 %v945, 0.8187308
  %v993 = vadd.f32 %v992, %v944
  %v994 = vadd.f32 %v993, %v987
  %995 = vst [vmem:[#allocation5] sm:$0xff] %v994
  %v996 = vmul.f32 %v946, 0.9048374
  %v997 = vadd.f32 %v996, %v945
  %v998 = vsel %vm947, 0.0, %v997
  %999 = vst [vmem:[#allocation6] sm:$0xff] %v998
  %v1000 = vld [vmem:[#allocation7] sm:$0xf]
  %v1001 = vld [vmem:[#allocation7 + $0x4] sm:$0xf]
  %v1002 = vld [vmem:[#allocation7 + $0x8] sm:$0xf]
  %v1003 = vld [vmem:[#allocation7 + $0xc] sm:$0xf]
  %v1004 = vld [vmem:[#allocation7 + $0x10] sm:$0xf]
  %v1005 = vld [vmem:[#allocation7 + $0x14] sm:$0xf]
  %v1006 = vld [vmem:[#allocation7 + $0x18] sm:$0xf]
  %v1007 = vld [vmem:[#allocation7 + $0x1c] sm:$0xf]
  %v1008 = vld [vmem:[%s4] sm:$0xf]
  %v1009 = vld [vmem:[%s4 + $0x4] sm:$0xf]
  %v1010 = vld [vmem:[%s4 + $0x8] sm:$0xf]
  %v1011 = vld [vmem:[%s4 + $0xc] sm:$0xf]
  %v1012 = vld [vmem:[%s4 + $0x10] sm:$0xf]
  %v1013 = vld [vmem:[%s4 + $0x14] sm:$0xf]
  %v1014 = vld [vmem:[%s4 + $0x18] sm:$0xf]
  %v1015 = vld [vmem:[%s4 + $0x1c] sm:$0xf]
  %v1016 = vld [vmem:[%s4 + $0x20] sm:$0xf]
  %v1017 = vld [vmem:[%s4 + $0x24] sm:$0xf]
  %v1018 = vld [vmem:[%s4 + $0x28] sm:$0xf]
  %v1019 = vld [vmem:[%s4 + $0x2c] sm:$0xf]
  %v1020 = vld [vmem:[%s4 + $0x30] sm:$0xf]
  %v1021 = vld [vmem:[%s4 + $0x34] sm:$0xf]
  %v1022 = vld [vmem:[%s4 + $0x38] sm:$0xf]
  %v1023 = vld [vmem:[%s4 + $0x3c] sm:$0xf]
  %v1032 = vunpack.c.l.b16 %v1000
  %v1033 = vunpack.c.l.b16 %v1001
  %v1034 = vunpack.c.l.b16 %v1002
  %v1035 = vunpack.c.l.b16 %v1003
  %v1036 = vunpack.c.l.b16 %v1004
  %v1037 = vunpack.c.l.b16 %v1005
  %v1038 = vunpack.c.l.b16 %v1006
  %v1039 = vunpack.c.l.b16 %v1007
  %v1040 = vpack.c.b16 %v1033, %v1032
  %v1041 = vpack.c.b16 %v1035, %v1034
  %v1042 = vpack.c.b16 %v1037, %v1036
  %v1043 = vpack.c.b16 %v1039, %v1038
  %v1064 = vunpack.c.l.b16 %v1008
  %v1065 = vunpack.c.l.b16 %v1009
  %v1066 = vunpack.c.l.b16 %v1010
  %v1067 = vunpack.c.l.b16 %v1011
  %v1068 = vunpack.c.l.b16 %v1012
  %v1069 = vunpack.c.l.b16 %v1013
  %v1070 = vunpack.c.l.b16 %v1014
  %v1071 = vunpack.c.l.b16 %v1015
  %v1072 = vunpack.c.l.b16 %v1016
  %v1073 = vunpack.c.l.b16 %v1017
  %v1074 = vunpack.c.l.b16 %v1018
  %v1075 = vunpack.c.l.b16 %v1019
  %v1076 = vunpack.c.l.b16 %v1020
  %v1077 = vunpack.c.l.b16 %v1021
  %v1078 = vunpack.c.l.b16 %v1022
  %v1079 = vunpack.c.l.b16 %v1023
  %v1080 = vpack.c.b16 %v1065, %v1064
  %v1081 = vpack.c.b16 %v1067, %v1066
  %v1082 = vpack.c.b16 %v1069, %v1068
  %v1083 = vpack.c.b16 %v1071, %v1070
  %v1084 = vpack.c.b16 %v1073, %v1072
  %v1085 = vpack.c.b16 %v1075, %v1074
  %v1086 = vpack.c.b16 %v1077, %v1076
  %v1087 = vpack.c.b16 %v1079, %v1078
  %1096 = vmatprep.subr.bf16.mxu0 0
  %1097 = vmatpush1.bf16.msra.mxu0 %v1087
  %1098 = vmatprep.subr.bf16.mxu0 0
  %1099 = vmatpush1.bf16.msra.mxu0 %v1086
  %1100 = vmatprep.subr.bf16.mxu0 0
  %1101 = vmatpush1.bf16.msra.mxu0 %v1085
  %1102 = vmatprep.subr.bf16.mxu0 0
  %1103 = vmatpush1.bf16.msra.mxu0 %v1084
  %1104 = vmatprep.subr.bf16.mxu0 0
  %1105 = vmatpush1.bf16.msra.mxu0 %v1083
  %1106 = vmatprep.subr.bf16.mxu0 0
  %1107 = vmatpush1.bf16.msra.mxu0 %v1082
  %1108 = vmatprep.subr.bf16.mxu0 0
  %1109 = vmatpush1.bf16.msra.mxu0 %v1081
  %1110 = vmatprep.subr.bf16.mxu0 0
  %1111 = vmatpush1.bf16.msra.mxu0 %v1080
  %1112 = vmatprep.subr.bf16.mxu0 0
  %1113 = vmatpush2.bf16.msra.mxu0 0
  %1114 = vmatprep.subr.bf16.mxu0 0
  %1115 = vmatpush2.bf16.msra.mxu0 0
  %1116 = vmatprep.subr.bf16.mxu0 0
  %1117 = vmatpush2.bf16.msra.mxu0 0
  %1118 = vmatprep.subr.bf16.mxu0 0
  %1119 = vmatpush2.bf16.msra.mxu0 0
  %1120 = vmatprep.subr.bf16.mxu0 0
  %1121 = vmatpush2.bf16.msra.mxu0 0
  %1122 = vmatprep.subr.bf16.mxu0 0
  %1123 = vmatpush2.bf16.msra.mxu0 0
  %1124 = vmatprep.subr.bf16.mxu0 0
  %1125 = vmatpush2.bf16.msra.mxu0 0
  %1126 = vmatprep.subr.bf16.mxu0 0
  %1127 = vmatpush2.bf16.msra.mxu0 0
  %1128 = vmatprep.mubr.bf16.mxu0 0
  %1129 = vmatmul.mubr.bf16.gmra.mxu0 %v1040
  %v1130 = vpop.f32.mrf.mxu0
  %v1131 = vadd.f32 0.0, %v1130
  %v1132 = vpop.f32.mrf.mxu0
  %v1133 = vpop.f32.mrf.mxu0
  %v1134 = vadd.f32 0.0, %v1133
  %v1135 = vpop.f32.mrf.mxu0
  %1136 = vmatprep.mubr.bf16.mxu0 0
  %1137 = vmatmul.mubr.bf16.gmra.mxu0 %v1041
  %v1138 = vpop.f32.mrf.mxu0
  %v1139 = vadd.f32 0.0, %v1138
  %v1140 = vpop.f32.mrf.mxu0
  %v1141 = vpop.f32.mrf.mxu0
  %v1142 = vadd.f32 0.0, %v1141
  %v1143 = vpop.f32.mrf.mxu0
  %1144 = vmatprep.mubr.bf16.mxu0 0
  %1145 = vmatmul.mubr.bf16.gmra.mxu0 %v1042
  %v1146 = vpop.f32.mrf.mxu0
  %v1147 = vadd.f32 0.0, %v1146
  %v1148 = vpop.f32.mrf.mxu0
  %v1149 = vpop.f32.mrf.mxu0
  %v1150 = vadd.f32 0.0, %v1149
  %v1151 = vpop.f32.mrf.mxu0
  %1152 = vmatprep.mubr.bf16.mxu0 0
  %1153 = vmatmul.mubr.bf16.gmra.mxu0 %v1043
  %v1154 = vpop.f32.mrf.mxu0
  %v1155 = vadd.f32 0.0, %v1154
  %v1156 = vpop.f32.mrf.mxu0
  %v1157 = vpop.f32.mrf.mxu0
  %v1158 = vadd.f32 0.0, %v1157
  %v1159 = vpop.f32.mrf.mxu0
  %1160 = vdwg.mxu0
  %1161 = vst [vmem:[%s5] sm:$0xff] %v1131
  %1162 = vst [vmem:[%s5 + $0x8] sm:$0xff] %v1134
  %1163 = vst [vmem:[%s5 + $0x10] sm:$0xff] %v1139
  %1164 = vst [vmem:[%s5 + $0x18] sm:$0xff] %v1142
  %1165 = vst [vmem:[%s5 + $0x20] sm:$0xff] %v1147
  %1166 = vst [vmem:[%s5 + $0x28] sm:$0xff] %v1150
  %1167 = vst [vmem:[%s5 + $0x30] sm:$0xff] %v1155
  %1168 = vst [vmem:[%s5 + $0x38] sm:$0xff] %v1158
  %v1169 = vld [vmem:[%s5] sm:$0xff]
  %v1170 = vld [vmem:[#allocation8] sm:$0xff]
  %v1171 = vld [vmem:[#allocation9] sm:$0xff]
  %v1172 = vmul.f32 %v1170, 0.8187308
  %v1173 = vadd.f32 %v1172, %v1169
  %v1174 = vmul.f32 %v1171, 0.9048374
  %v1175 = vadd.f32 %v1174, %v1170
  %1176 = vst [vmem:[%s5] sm:$0xff] %v1175
  %1177 = vst [vmem:[#allocation8] sm:$0xff] %v1173
  %1178 = vst [vmem:[#allocation9] sm:$0xff] %v1175
  %s1179 = scalar_lea.vmem %s5, 8
  %v1180 = vld [vmem:[%s1179] sm:$0xff]
  %v1181 = vld [vmem:[#allocation8] sm:$0xff]
  %v1182 = vld [vmem:[#allocation9] sm:$0xff]
  %v1183 = vmul.f32 %v1181, 0.8187308
  %v1184 = vadd.f32 %v1183, %v1180
  %v1185 = vmul.f32 %v1182, 0.9048374
  %v1186 = vadd.f32 %v1185, %v1181
  %1187 = vst [vmem:[%s1179] sm:$0xff] %v1186
  %1188 = vst [vmem:[#allocation8] sm:$0xff] %v1184
  %1189 = vst [vmem:[#allocation9] sm:$0xff] %v1186
  %s1190 = scalar_lea.vmem %s5, 16
  %v1191 = vld [vmem:[%s1190] sm:$0xff]
  %v1192 = vld [vmem:[#allocation8] sm:$0xff]
  %v1193 = vld [vmem:[#allocation9] sm:$0xff]
  %v1194 = vmul.f32 %v1192, 0.8187308
  %v1195 = vadd.f32 %v1194, %v1191
  %v1196 = vmul.f32 %v1193, 0.9048374
  %v1197 = vadd.f32 %v1196, %v1192
  %1198 = vst [vmem:[%s1190] sm:$0xff] %v1197
  %1199 = vst [vmem:[#allocation8] sm:$0xff] %v1195
  %1200 = vst [vmem:[#allocation9] sm:$0xff] %v1197
  %s1201 = scalar_lea.vmem %s5, 24
  %v1202 = vld [vmem:[%s1201] sm:$0xff]
  %v1203 = vld [vmem:[#allocation8] sm:$0xff]
  %v1204 = vld [vmem:[#allocation9] sm:$0xff]
  %v1205 = vmul.f32 %v1203, 0.8187308
  %v1206 = vadd.f32 %v1205, %v1202
  %v1207 = vmul.f32 %v1204, 0.9048374
  %v1208 = vadd.f32 %v1207, %v1203
  %1209 = vst [vmem:[%s1201] sm:$0xff] %v1208
  %1210 = vst [vmem:[#allocation8] sm:$0xff] %v1206
  %1211 = vst [vmem:[#allocation9] sm:$0xff] %v1208
  %s1212 = scalar_lea.vmem %s5, 32
  %v1213 = vld [vmem:[%s1212] sm:$0xff]
  %v1214 = vld [vmem:[#allocation8] sm:$0xff]
  %v1215 = vld [vmem:[#allocation9] sm:$0xff]
  %v1216 = vmul.f32 %v1214, 0.8187308
  %v1217 = vadd.f32 %v1216, %v1213
  %v1218 = vmul.f32 %v1215, 0.9048374
  %v1219 = vadd.f32 %v1218, %v1214
  %1220 = vst [vmem:[%s1212] sm:$0xff] %v1219
  %1221 = vst [vmem:[#allocation8] sm:$0xff] %v1217
  %1222 = vst [vmem:[#allocation9] sm:$0xff] %v1219
  %s1223 = scalar_lea.vmem %s5, 40
  %v1224 = vld [vmem:[%s1223] sm:$0xff]
  %v1225 = vld [vmem:[#allocation8] sm:$0xff]
  %v1226 = vld [vmem:[#allocation9] sm:$0xff]
  %v1227 = vmul.f32 %v1225, 0.8187308
  %v1228 = vadd.f32 %v1227, %v1224
  %v1229 = vmul.f32 %v1226, 0.9048374
  %v1230 = vadd.f32 %v1229, %v1225
  %1231 = vst [vmem:[%s1223] sm:$0xff] %v1230
  %1232 = vst [vmem:[#allocation8] sm:$0xff] %v1228
  %1233 = vst [vmem:[#allocation9] sm:$0xff] %v1230
  %s1234 = scalar_lea.vmem %s5, 48
  %v1235 = vld [vmem:[%s1234] sm:$0xff]
  %v1236 = vld [vmem:[#allocation8] sm:$0xff]
  %v1237 = vld [vmem:[#allocation9] sm:$0xff]
  %v1238 = vmul.f32 %v1236, 0.8187308
  %v1239 = vadd.f32 %v1238, %v1235
  %v1240 = vmul.f32 %v1237, 0.9048374
  %v1241 = vadd.f32 %v1240, %v1236
  %1242 = vst [vmem:[%s1234] sm:$0xff] %v1241
  %1243 = vst [vmem:[#allocation8] sm:$0xff] %v1239
  %1244 = vst [vmem:[#allocation9] sm:$0xff] %v1241
  %s1245 = scalar_lea.vmem %s5, 56
  %v1246 = vld [vmem:[%s1245] sm:$0xff]
  %v1247 = vld [vmem:[#allocation8] sm:$0xff]
  %v1248 = vld [vmem:[#allocation9] sm:$0xff]
  %v1249 = vmul.f32 %v1247, 0.8187308
  %v1250 = vadd.f32 %v1249, %v1246
  %v1251 = vmul.f32 %v1248, 0.9048374
  %v1252 = vadd.f32 %v1251, %v1247
  %1253 = vst [vmem:[%s1245] sm:$0xff] %v1252
  %1254 = vst [vmem:[#allocation8] sm:$0xff] %v1250
  %1255 = vst [vmem:[#allocation9] sm:$0xff] %v1252
  // Predicated region
  $region26: #{_lambda_.1} parent=0 // pred_check
    _
  $region27: #{_lambda_.1} parent=0 // pred_check_branch
    %1257 = sbr.rel (0) target = $region29
  $region28: #{_lambda_.1} parent=0 // pred_region
    _
  $region29: #{_lambda_.1} parent=0 // pred_fallthru
    _
  // Predicated region
  $region30: #{_lambda_.1} parent=0 // pred_check
    _
  $region31: #{_lambda_.1} parent=0 // pred_check_branch
    %1259 = sbr.rel (0) target = $region33
  $region32: #{_lambda_.1} parent=0 // pred_region
    _
  $region33: #{_lambda_.1} parent=0 // pred_fallthru
    _

</llo_original>
